<compile_context>
chip_gen: v7x
topology: tpu7x:2x2x1
jax: 0.10.0
libtpu: 0.0.40
codegen_flags: <defaults>
</compile_context>

<pallas_src>
import numpy as np
import jax
import jax.numpy as jnp
from jax import lax
from jax.experimental import pallas as pl
from jax.experimental.pallas import tpu as pltpu

_BN_EPS = 1e-5
_LEAKY_SLOPE = 0.01


# ----------------------------------------------------------------------------
# Host-side builders: fold the PyTorch parameters into structured matrices.
# ----------------------------------------------------------------------------
def _bn_fold(bn):
    """Eval-mode BatchNorm -> per-channel (scale, bias)."""
    g = np.asarray(bn['g'], np.float32)
    b = np.asarray(bn['b'], np.float32)
    m = np.asarray(bn['m'], np.float32)
    v = np.asarray(bn['v'], np.float32)
    s = g / np.sqrt(v + _BN_EPS)
    return s, b - m * s


def _conv_band_matrix(w, seq_len):
    """Conv2d(Ci, T, kernel=(1,K), valid) as a (Ci*L, T*Lc) band matrix."""
    T, Ci, K = w.shape
    Lc = seq_len - K + 1
    A = np.zeros((Ci * seq_len, T * Lc), np.float32)
    for t in range(T):
        for ci in range(Ci):
            for lo in range(Lc):
                A[ci * seq_len + lo: ci * seq_len + lo + K, t * Lc + lo] = w[t, ci]
    return A, Lc


def _pool_place_matrix(T, Lc, pool, step, p_total, offset):
    """PowerLayer AvgPool(pool, step) + placement of this branch's pooled
    columns at [t*p_total + offset + m] (folds the torch.cat over time)."""
    Pn = (Lc - pool) // step + 1
    M = np.zeros((T * Lc, T * p_total), np.float32)
    for t in range(T):
        for m in range(Pn):
            M[t * Lc + m * step: t * Lc + m * step + pool,
              t * p_total + offset + m] = 1.0 / pool
    return M, Pn


def _aggregator_matrix(idx_graph, n_chan):
    """Mean over each brain area's electrode group: (A, C)."""
    A = len(idx_graph)
    starts = np.cumsum([0] + list(idx_graph))
    M = np.zeros((A, n_chan), np.float32)
    for a in range(A):
        lo = int(starts[a])
        hi = int(starts[a + 1]) if a < A - 1 else n_chan
        M[a, lo:hi] = 1.0 / (hi - lo)
    return M


# ----------------------------------------------------------------------------
# The fused kernel: whole LGGNet forward for the whole batch, one invocation.
# ----------------------------------------------------------------------------
def _lggnet_kernel(x_ref, abig_ref, cbrow_ref, mbig_ref, wmix_ref, cmix_ref,
                   pool2_ref, c2row_ref, lw_ref, lb_ref, aggm_ref, gsym_ref,
                   bns_ref, wg_ref, hbias_ref, wfc_ref, bsum_ref, bfc_ref,
                   o_ref):
    f32 = jnp.float32
    x = x_ref[...]                                                  # (B*C, Ci*L)

    # Tception convs: all 3 branches x num_T filters in ONE band-matrix matmul.
    y = jnp.dot(x, abig_ref[...], preferred_element_type=f32) + cbrow_ref[...]
    # PowerLayer: square -> avg pool (+ branch concat, folded into mbig) -> log.
    z = jnp.log(jnp.dot(y * y, mbig_ref[...], preferred_element_type=f32))
    # BN_t (folded) + 1x1 conv across num_T + LeakyReLU.
    u = jnp.dot(z, wmix_ref[...], preferred_element_type=f32) + cmix_ref[...]
    u = jnp.where(u > 0.0, u, _LEAKY_SLOPE * u)
    # AvgPool2d((1,2)) with BN_t_ scale folded in, BN_t_ bias as a row.
    feat = jnp.dot(u, pool2_ref[...], preferred_element_type=f32) + c2row_ref[...]

    # Local filter: relu(x * w - b).
    loc = jnp.maximum(feat * lw_ref[...] - lb_ref[...], 0.0)        # (B*C, F)

    # Brain-area aggregation (block-diagonal over batch).
    agg = jnp.dot(aggm_ref[...], loc, preferred_element_type=f32)   # (B*A, F)

    # Adjacency: self-similarity, relu(s * (G+G^T)), +I, symmetric normalize.
    n = agg.shape[0]
    s = lax.dot_general(agg, agg, (((1,), (1,)), ((), ())),
                        preferred_element_type=f32)                 # (B*A, B*A)
    rid = lax.broadcasted_iota(jnp.int32, (n, n), 0)
    cid = lax.broadcasted_iota(jnp.int32, (n, n), 1)
    eye = (rid == cid).astype(f32)                                  # in-kernel I
    adj = jnp.maximum(s * gsym_ref[...], 0.0) + eye
    rs_col = jnp.sum(adj, axis=1, keepdims=True)                    # (N, 1)
    rs_col = rs_col + jnp.where(rs_col == 0.0, 1.0, 0.0)
    rs_row = jnp.sum(adj, axis=0, keepdims=True)                    # adj symmetric
    rs_row = rs_row + jnp.where(rs_row == 0.0, 1.0, 0.0)
    adj = lax.rsqrt(rs_col) * adj * lax.rsqrt(rs_row)

    # bn (BatchNorm1d over brain areas, eval) + GCN linear, with the BN bias
    # and the GCN bias pre-folded into hbias; the BN scale is a cheap row
    # scale on the narrow G axis.  Then: relu(adj @ h_pre).
    h = bns_ref[...] * jnp.dot(agg, wg_ref[...],
                               preferred_element_type=f32) + hbias_ref[...]
    h = jnp.maximum(jnp.dot(adj, h, preferred_element_type=f32), 0.0)   # (B*A, G)

    # bn_ + flatten + fc1 + fc2 are all folded into wfc / bfc.
    per_row = jnp.sum(h * wfc_ref[...], axis=1, keepdims=True)          # (B*A, 1)
    logit = jnp.dot(bsum_ref[...], per_row,
                    preferred_element_type=f32) + bfc_ref[...]          # (B, 1)
    o_ref[...] = 1.0 / (1.0 + jnp.exp(-logit))


# ----------------------------------------------------------------------------
# Wrapper: build folded matrices, launch one gridless pallas_call.
# ----------------------------------------------------------------------------
def lggnet_pallas(x, params, idx_graph, pool, step):
    B, Ci, C, L = x.shape
    f32 = np.float32
    npf = lambda a: np.asarray(a, dtype=f32)
    T = npf(params['w_t1']).shape[0]

    # Tception band matrices + PowerLayer pool/placement matrices (3 branches).
    A_list, brow_list, Lc_list, P_list = [], [], [], []
    for wk, bk in (('w_t1', 'b_t1'), ('w_t2', 'b_t2'), ('w_t3', 'b_t3')):
        Amat, Lc = _conv_band_matrix(npf(params[wk]), L)
        A_list.append(Amat)
        Lc_list.append(Lc)
        P_list.append((Lc - pool) // step + 1)
        brow_list.append(np.repeat(npf(params[bk]), Lc))
    p_tot = int(sum(P_list))
    offsets = [0, P_list[0], P_list[0] + P_list[1]]
    M_list = [_pool_place_matrix(T, Lc_list[i], pool, step, p_tot, offsets[i])[0]
              for i in range(3)]
    abig = np.concatenate(A_list, axis=1)            # (Ci*L, sum_i T*Lc_i)
    cbrow = np.concatenate(brow_list)[None, :]
    mbig = np.concatenate(M_list, axis=0)            # (sum_i T*Lc_i, T*p_tot)

    # BN_t folded into the 1x1 conv over num_T (kron expansion over time cols).
    s_t, c_t = _bn_fold(params['bn_t'])
    wc = npf(params['w_1x1'])
    wcp = wc * s_t[None, :]
    cbp = npf(params['b_1x1']) + wc @ c_t
    wmix = np.kron(wcp.T, np.eye(p_tot, dtype=f32))
    cmix = np.repeat(cbp, p_tot)[None, :]

    # AvgPool2d((1,2)) with BN_t_ scale folded in; its bias as a row.
    s_t2, c_t2 = _bn_fold(params['bn_t2'])
    Lf = p_tot // 2
    pool2 = np.zeros((T * p_tot, T * Lf), f32)
    for t in range(T):
        for l in range(Lf):
            pool2[t * p_tot + 2 * l, t * Lf + l] = 0.5 * s_t2[t]
            pool2[t * p_tot + 2 * l + 1, t * Lf + l] = 0.5 * s_t2[t]
    c2row = np.repeat(c_t2, Lf)[None, :]

    # Local filter weights, tiled so the whole batch lives in the sublane axis.
    lw = np.tile(npf(params['local_w']), (B, 1))                   # (B*C, F)
    lb = np.tile(npf(params['local_b']).reshape(C, 1), (B, 1))     # (B*C, 1)

    # Aggregation / adjacency helpers, block-diagonal over the batch.
    n_area = len(idx_graph)
    agg_big = np.kron(np.eye(B, dtype=f32), _aggregator_matrix(idx_graph, C))
    g = npf(params['global_adj'])
    gsym_big = np.kron(np.eye(B, dtype=f32), g + g.T)

    # bn (BatchNorm1d over brain areas, eval) + GCN bias fold:
    #   h_pre = bns * (agg @ Wg) + hbias,   hbias = outer(c_bn, colsum(Wg)) - b_gcn
    s_bn, c_bn = _bn_fold(params['bn1'])
    bns = np.tile(s_bn.reshape(-1, 1), (B, 1))                     # (B*A, 1)
    wg = npf(params['gcn_w'])                                      # (F, G)
    gbrow = npf(params['gcn_b']).reshape(1, -1)                    # (1, G)
    n_graph = wg.shape[1]
    hbias = np.tile(np.outer(c_bn, wg.sum(axis=0)) - gbrow, (B, 1))  # (B*A, G)

    # bn_ + flatten + fc1 + fc2 folded into one per-element weight + scalar.
    s_bn2, c_bn2 = _bn_fold(params['bn2'])
    w1 = npf(params['fc1_w']); b1 = npf(params['fc1_b'])
    w2 = npf(params['fc2_w']); b2 = npf(params['fc2_b'])
    wm = (w1.T @ w2.T).reshape(n_area, n_graph)                    # (A, G)
    bfc_val = (b1 @ w2.T + b2).reshape(()) + np.sum(c_bn2[:, None] * wm)
    wfc = np.tile(s_bn2[:, None] * wm, (B, 1))                     # (B*A, G)
    bfc = np.full((1, 1), bfc_val, dtype=f32)
    bsum = np.kron(np.eye(B, dtype=f32), np.ones((1, n_area), f32))

    # Layout plumbing only: (B, Ci, C, L) -> (B*C, Ci*L).
    x2d = jnp.reshape(jnp.transpose(x, (0, 2, 1, 3)), (B * C, Ci * L))

    operands = [x2d] + [jnp.asarray(a) for a in (
        abig, cbrow, mbig, wmix, cmix, pool2, c2row, lw, lb,
        agg_big, gsym_big, bns, wg, hbias, wfc, bsum, bfc)]

    out = pl.pallas_call(
        _lggnet_kernel,
        out_shape=jax.ShapeDtypeStruct((B, 1), jnp.float32),
        in_specs=[pl.BlockSpec(memory_space=pltpu.MemorySpace.VMEM)] * len(operands),
        out_specs=pl.BlockSpec(memory_space=pltpu.MemorySpace.VMEM),
    )(*operands)
    return out[:, 0]


# ----------------------------------------------------------------------------
# Pure-JAX reference mirroring the PyTorch module (eval mode).
# ----------------------------------------------------------------------------
def _bn_eval_ref(x, bn, axis):
    shape = [1] * x.ndim
    shape[axis] = -1
    s = bn['g'].reshape(shape) / jnp.sqrt(bn['v'].reshape(shape) + _BN_EPS)
    return (x - bn['m'].reshape(shape)) * s + bn['b'].reshape(shape)


def lggnet_reference(x, P, idx_graph, pool, step):
    B, Ci, C, L = x.shape
    T = P['w_t1'].shape[0]

    def tception(w, b):
        K = w.shape[-1]
        Lc = L - K + 1
        wins = jnp.stack([x[..., k:k + Lc] for k in range(K)], axis=-1)
        y = jnp.einsum('biclk,tik->btcl', wins, w) + b[None, :, None, None]
        y2 = y * y
        Pn = (Lc - pool) // step + 1
        pooled = jnp.stack([jnp.mean(y2[..., m * step:m * step + pool], axis=-1)
                            for m in range(Pn)], axis=-1)
        return jnp.log(pooled)

    out = jnp.concatenate([tception(P['w_t1'], P['b_t1']),
                           tception(P['w_t2'], P['b_t2']),
                           tception(P['w_t3'], P['b_t3'])], axis=-1)   # (B,T,C,Pt)
    out = _bn_eval_ref(out, P['bn_t'], axis=1)
    out = jnp.einsum('st,btcl->bscl', P['w_1x1'], out) + P['b_1x1'][None, :, None, None]
    out = jnp.where(out > 0, out, _LEAKY_SLOPE * out)
    Pc = out.shape[-1]
    out = jnp.mean(out[..., :2 * (Pc // 2)].reshape(B, T, C, Pc // 2, 2), axis=-1)
    out = _bn_eval_ref(out, P['bn_t2'], axis=1)
    out = jnp.transpose(out, (0, 2, 1, 3)).reshape(B, C, -1)           # (B,C,F)
    out = jnp.maximum(out * P['local_w'][None] - P['local_b'], 0.0)

    A = len(idx_graph)
    starts = np.cumsum([0] + list(idx_graph))
    segs = []
    for a in range(A):
        lo = int(starts[a])
        hi = int(starts[a + 1]) if a < A - 1 else C
        segs.append(jnp.mean(out[:, lo:hi], axis=1))
    out = jnp.stack(segs, axis=1)                                       # (B,A,F)

    s = jnp.einsum('baf,bcf->bac', out, out)
    gsym = P['global_adj'] + P['global_adj'].T
    adj = jnp.maximum(s * gsym[None], 0.0) + jnp.eye(A, dtype=x.dtype)[None]
    rowsum = jnp.sum(adj, axis=-1)
    rowsum = rowsum + (rowsum == 0.0).astype(x.dtype)
    d = rowsum ** -0.5
    adj = d[:, :, None] * adj * d[:, None, :]

    out = _bn_eval_ref(out, P['bn1'], axis=1)
    h = jnp.einsum('baf,fg->bag', out, P['gcn_w']) - P['gcn_b']
    h = jnp.maximum(jnp.einsum('bac,bcg->bag', adj, h), 0.0)
    h = _bn_eval_ref(h, P['bn2'], axis=1)

    flat = h.reshape(B, -1)
    y = flat @ P['fc1_w'].T + P['fc1_b']
    y = y @ P['fc2_w'].T + P['fc2_b']
    return jax.nn.sigmoid(y)[:, 0]


# ----------------------------------------------------------------------------
if __name__ == "__main__":
    # Small LGGNet configuration:
    #   input_size = (1, 16, 64), sampling_rate = 32, num_T = 4,
    #   pool = 8, pool_step_rate = 0.5, idx_graph = [4,4,4,4], out_graph = 8.
    B, Ci, C, L = 2, 1, 16, 64
    fs, T = 32, 4
    pool, pool_step_rate = 8, 0.5
    step = int(pool * pool_step_rate)
    idx_graph = [4, 4, 4, 4]
    out_graph = 8
    K1, K2, K3 = (int(w * fs) for w in (0.5, 0.25, 0.125))

    def conv_pool_len(K):
        return (L - K + 1 - pool) // step + 1

    p_tot = sum(conv_pool_len(K) for K in (K1, K2, K3))
    Lf = p_tot // 2
    F = T * Lf
    A = len(idx_graph)

    key = jax.random.PRNGKey(0)
    ks = iter(jax.random.split(key, 64))
    nrm = lambda shape, scale: scale * jax.random.normal(next(ks), shape, jnp.float32)

    def bn(c):
        return dict(g=1.0 + nrm((c,), 0.1), b=nrm((c,), 0.1),
                    m=nrm((c,), 0.1), v=1.0 + jnp.abs(nrm((c,), 0.1)))

    params = dict(
        w_t1=nrm((T, Ci, K1), 0.1), b_t1=nrm((T,), 0.05),
        w_t2=nrm((T, Ci, K2), 0.1), b_t2=nrm((T,), 0.05),
        w_t3=nrm((T, Ci, K3), 0.1), b_t3=nrm((T,), 0.05),
        bn_t=bn(T), bn_t2=bn(T),
        w_1x1=nrm((T, T), 0.3), b_1x1=nrm((T,), 0.05),
        local_w=nrm((C, F), 0.5), local_b=nrm((1, C, 1), 0.1),
        global_adj=nrm((A, A), 0.5),
        bn1=bn(A), bn2=bn(A),
        gcn_w=nrm((F, out_graph), 0.2), gcn_b=nrm((1, 1, out_graph), 0.1),
        fc1_w=nrm((5, A * out_graph), 0.2), fc1_b=nrm((5,), 0.1),
        fc2_w=nrm((1, 5), 0.3), fc2_b=nrm((1,), 0.1),
    )
    x = jax.random.normal(next(ks), (B, Ci, C, L), jnp.float32)

    out = lggnet_pallas(x, params, idx_graph, pool, step)
    out = jax.block_until_ready(out)

    with jax.default_matmul_precision("highest"):
        ref = lggnet_reference(x, params, idx_graph, pool, step)
    np.testing.assert_allclose(np.asarray(out), np.asarray(ref),
                               rtol=2e-3, atol=2e-4)
    print("KERNEL_OK")
</pallas_src>

<mosaic_0001>
module attributes {stable_mosaic.version = 11 : i64} {
  func.func @_lggnet_kernel(%arg0: memref<32x64xf32, #tpu.memory_space<vmem>>, %arg1: memref<64x668xf32, #tpu.memory_space<vmem>>, %arg2: memref<1x668xf32, #tpu.memory_space<vmem>>, %arg3: memref<668x152xf32, #tpu.memory_space<vmem>>, %arg4: memref<152x152xf32, #tpu.memory_space<vmem>>, %arg5: memref<1x152xf32, #tpu.memory_space<vmem>>, %arg6: memref<152x76xf32, #tpu.memory_space<vmem>>, %arg7: memref<1x76xf32, #tpu.memory_space<vmem>>, %arg8: memref<32x76xf32, #tpu.memory_space<vmem>>, %arg9: memref<32x1xf32, #tpu.memory_space<vmem>>, %arg10: memref<8x32xf32, #tpu.memory_space<vmem>>, %arg11: memref<8x8xf32, #tpu.memory_space<vmem>>, %arg12: memref<8x1xf32, #tpu.memory_space<vmem>>, %arg13: memref<76x8xf32, #tpu.memory_space<vmem>>, %arg14: memref<8x8xf32, #tpu.memory_space<vmem>>, %arg15: memref<8x8xf32, #tpu.memory_space<vmem>>, %arg16: memref<2x8xf32, #tpu.memory_space<vmem>>, %arg17: memref<1x1xf32, #tpu.memory_space<vmem>>, %arg18: memref<2x1xf32, #tpu.memory_space<vmem>>) attributes {dimension_semantics = [], scalar_prefetch = 0 : i64, scratch_operands = 0 : i64, tpu.core_type = #tpu.core_type<tc>} {
    %c0 = arith.constant 0 : index
    %c0_0 = arith.constant 0 : index
    %0 = vector.load %arg0[%c0, %c0_0] : memref<32x64xf32, #tpu.memory_space<vmem>>, vector<32x64xf32>
    %c0_1 = arith.constant 0 : index
    %c0_2 = arith.constant 0 : index
    %1 = vector.load %arg1[%c0_1, %c0_2] : memref<64x668xf32, #tpu.memory_space<vmem>>, vector<64x668xf32>
    %cst = arith.constant dense<0.000000e+00> : vector<32x668xf32>
    %2 = tpu.matmul %0, %1, %cst {dimension_numbers = #tpu.dot_dimension_numbers<[1], [0], [0], [1], [0, 0, 1, 1], [], []>} : vector<32x64xf32>, vector<64x668xf32>, vector<32x668xf32> -> vector<32x668xf32>
    %c0_3 = arith.constant 0 : index
    %c0_4 = arith.constant 0 : index
    %3 = vector.load %arg2[%c0_3, %c0_4] : memref<1x668xf32, #tpu.memory_space<vmem>>, vector<1x668xf32>
    %4 = vector.broadcast %3 : vector<1x668xf32> to vector<32x668xf32>
    %5 = arith.addf %2, %4 : vector<32x668xf32>
    %6 = arith.mulf %5, %5 : vector<32x668xf32>
    %c0_5 = arith.constant 0 : index
    %c0_6 = arith.constant 0 : index
    %7 = vector.load %arg3[%c0_5, %c0_6] : memref<668x152xf32, #tpu.memory_space<vmem>>, vector<668x152xf32>
    %cst_7 = arith.constant dense<0.000000e+00> : vector<32x152xf32>
    %8 = tpu.matmul %6, %7, %cst_7 {dimension_numbers = #tpu.dot_dimension_numbers<[1], [0], [0], [1], [0, 0, 1, 1], [], []>} : vector<32x668xf32>, vector<668x152xf32>, vector<32x152xf32> -> vector<32x152xf32>
    %9 = math.log %8 : vector<32x152xf32>
    %c0_8 = arith.constant 0 : index
    %c0_9 = arith.constant 0 : index
    %10 = vector.load %arg4[%c0_8, %c0_9] : memref<152x152xf32, #tpu.memory_space<vmem>>, vector<152x152xf32>
    %cst_10 = arith.constant dense<0.000000e+00> : vector<32x152xf32>
    %11 = tpu.matmul %9, %10, %cst_10 {dimension_numbers = #tpu.dot_dimension_numbers<[1], [0], [0], [1], [0, 0, 1, 1], [], []>} : vector<32x152xf32>, vector<152x152xf32>, vector<32x152xf32> -> vector<32x152xf32>
    %c0_11 = arith.constant 0 : index
    %c0_12 = arith.constant 0 : index
    %12 = vector.load %arg5[%c0_11, %c0_12] : memref<1x152xf32, #tpu.memory_space<vmem>>, vector<1x152xf32>
    %13 = vector.broadcast %12 : vector<1x152xf32> to vector<32x152xf32>
    %14 = arith.addf %11, %13 : vector<32x152xf32>
    %cst_13 = arith.constant 0.000000e+00 : f32
    %15 = vector.broadcast %cst_13 : f32 to vector<32x152xf32>
    %16 = arith.cmpf ogt, %14, %15 : vector<32x152xf32>
    %cst_14 = arith.constant 0.00999999977 : f32
    %17 = vector.broadcast %cst_14 : f32 to vector<32x152xf32>
    %18 = arith.mulf %17, %14 : vector<32x152xf32>
    %19 = arith.select %16, %14, %18 : vector<32x152xi1>, vector<32x152xf32>
    %c0_15 = arith.constant 0 : index
    %c0_16 = arith.constant 0 : index
    %20 = vector.load %arg6[%c0_15, %c0_16] : memref<152x76xf32, #tpu.memory_space<vmem>>, vector<152x76xf32>
    %cst_17 = arith.constant dense<0.000000e+00> : vector<32x76xf32>
    %21 = tpu.matmul %19, %20, %cst_17 {dimension_numbers = #tpu.dot_dimension_numbers<[1], [0], [0], [1], [0, 0, 1, 1], [], []>} : vector<32x152xf32>, vector<152x76xf32>, vector<32x76xf32> -> vector<32x76xf32>
    %c0_18 = arith.constant 0 : index
    %c0_19 = arith.constant 0 : index
    %22 = vector.load %arg7[%c0_18, %c0_19] : memref<1x76xf32, #tpu.memory_space<vmem>>, vector<1x76xf32>
    %23 = vector.broadcast %22 : vector<1x76xf32> to vector<32x76xf32>
    %24 = arith.addf %21, %23 : vector<32x76xf32>
    %c0_20 = arith.constant 0 : index
    %c0_21 = arith.constant 0 : index
    %25 = vector.load %arg8[%c0_20, %c0_21] : memref<32x76xf32, #tpu.memory_space<vmem>>, vector<32x76xf32>
    %26 = arith.mulf %24, %25 : vector<32x76xf32>
    %c0_22 = arith.constant 0 : index
    %c0_23 = arith.constant 0 : index
    %27 = vector.load %arg9[%c0_22, %c0_23] : memref<32x1xf32, #tpu.memory_space<vmem>>, vector<32x1xf32>
    %28 = vector.broadcast %27 : vector<32x1xf32> to vector<32x76xf32>
    %29 = arith.subf %26, %28 : vector<32x76xf32>
    %cst_24 = arith.constant 0.000000e+00 : f32
    %30 = vector.broadcast %cst_24 : f32 to vector<32x76xf32>
    %31 = arith.maximumf %29, %30 : vector<32x76xf32>
    %c0_25 = arith.constant 0 : index
    %c0_26 = arith.constant 0 : index
    %32 = vector.load %arg10[%c0_25, %c0_26] : memref<8x32xf32, #tpu.memory_space<vmem>>, vector<8x32xf32>
    %cst_27 = arith.constant dense<0.000000e+00> : vector<8x76xf32>
    %33 = tpu.matmul %32, %31, %cst_27 {dimension_numbers = #tpu.dot_dimension_numbers<[1], [0], [0], [1], [0, 0, 1, 1], [], []>} : vector<8x32xf32>, vector<32x76xf32>, vector<8x76xf32> -> vector<8x76xf32>
    %cst_28 = arith.constant dense<0.000000e+00> : vector<8x8xf32>
    %34 = tpu.matmul %33, %33, %cst_28 {dimension_numbers = #tpu.dot_dimension_numbers<[1], [1], [0], [0], [0, 0, 1, 0], [], []>} : vector<8x76xf32>, vector<8x76xf32>, vector<8x8xf32> -> vector<8x8xf32>
    %35 = tpu.iota {dimensions = array<i32: 0>} : vector<8x8xi32>
    %36 = tpu.iota {dimensions = array<i32: 1>} : vector<8x8xi32>
    %37 = arith.cmpi eq, %35, %36 : vector<8x8xi32>
    %38 = arith.extui %37 : vector<8x8xi1> to vector<8x8xi32>
    %39 = arith.sitofp %38 : vector<8x8xi32> to vector<8x8xf32>
    %c0_29 = arith.constant 0 : index
    %c0_30 = arith.constant 0 : index
    %40 = vector.load %arg11[%c0_29, %c0_30] : memref<8x8xf32, #tpu.memory_space<vmem>>, vector<8x8xf32>
    %41 = arith.mulf %34, %40 : vector<8x8xf32>
    %cst_31 = arith.constant 0.000000e+00 : f32
    %42 = vector.broadcast %cst_31 : f32 to vector<8x8xf32>
    %43 = arith.maximumf %41, %42 : vector<8x8xf32>
    %44 = arith.addf %43, %39 : vector<8x8xf32>
    %cst_32 = arith.constant dense<0.000000e+00> : vector<8xf32>
    %45 = vector.multi_reduction <add>, %44, %cst_32 [1] : vector<8x8xf32> to vector<8xf32>
    %46 = vector.shape_cast %45 : vector<8xf32> to vector<8x1xf32>
    %cst_33 = arith.constant 0.000000e+00 : f32
    %47 = vector.broadcast %cst_33 : f32 to vector<8x1xf32>
    %48 = arith.cmpf oeq, %46, %47 : vector<8x1xf32>
    %cst_34 = arith.constant 1.000000e+00 : f32
    %cst_35 = arith.constant 0.000000e+00 : f32
    %49 = vector.broadcast %cst_34 : f32 to vector<8x1xf32>
    %50 = vector.broadcast %cst_35 : f32 to vector<8x1xf32>
    %51 = arith.select %48, %49, %50 : vector<8x1xi1>, vector<8x1xf32>
    %52 = arith.addf %46, %51 : vector<8x1xf32>
    %cst_36 = arith.constant dense<0.000000e+00> : vector<8xf32>
    %53 = vector.multi_reduction <add>, %44, %cst_36 [0] : vector<8x8xf32> to vector<8xf32>
    %54 = vector.shape_cast %53 : vector<8xf32> to vector<1x8xf32>
    %cst_37 = arith.constant 0.000000e+00 : f32
    %55 = vector.broadcast %cst_37 : f32 to vector<1x8xf32>
    %56 = arith.cmpf oeq, %54, %55 : vector<1x8xf32>
    %cst_38 = arith.constant 1.000000e+00 : f32
    %cst_39 = arith.constant 0.000000e+00 : f32
    %57 = vector.broadcast %cst_38 : f32 to vector<1x8xf32>
    %58 = vector.broadcast %cst_39 : f32 to vector<1x8xf32>
    %59 = arith.select %56, %57, %58 : vector<1x8xi1>, vector<1x8xf32>
    %60 = arith.addf %54, %59 : vector<1x8xf32>
    %61 = math.rsqrt %52 : vector<8x1xf32>
    %62 = vector.broadcast %61 : vector<8x1xf32> to vector<8x8xf32>
    %63 = arith.mulf %62, %44 : vector<8x8xf32>
    %64 = math.rsqrt %60 : vector<1x8xf32>
    %65 = vector.broadcast %64 : vector<1x8xf32> to vector<8x8xf32>
    %66 = arith.mulf %63, %65 : vector<8x8xf32>
    %c0_40 = arith.constant 0 : index
    %c0_41 = arith.constant 0 : index
    %67 = vector.load %arg12[%c0_40, %c0_41] : memref<8x1xf32, #tpu.memory_space<vmem>>, vector<8x1xf32>
    %c0_42 = arith.constant 0 : index
    %c0_43 = arith.constant 0 : index
    %68 = vector.load %arg13[%c0_42, %c0_43] : memref<76x8xf32, #tpu.memory_space<vmem>>, vector<76x8xf32>
    %cst_44 = arith.constant dense<0.000000e+00> : vector<8x8xf32>
    %69 = tpu.matmul %33, %68, %cst_44 {dimension_numbers = #tpu.dot_dimension_numbers<[1], [0], [0], [1], [0, 0, 1, 1], [], []>} : vector<8x76xf32>, vector<76x8xf32>, vector<8x8xf32> -> vector<8x8xf32>
    %70 = vector.broadcast %67 : vector<8x1xf32> to vector<8x8xf32>
    %71 = arith.mulf %70, %69 : vector<8x8xf32>
    %c0_45 = arith.constant 0 : index
    %c0_46 = arith.constant 0 : index
    %72 = vector.load %arg14[%c0_45, %c0_46] : memref<8x8xf32, #tpu.memory_space<vmem>>, vector<8x8xf32>
    %73 = arith.addf %71, %72 : vector<8x8xf32>
    %cst_47 = arith.constant dense<0.000000e+00> : vector<8x8xf32>
    %74 = tpu.matmul %66, %73, %cst_47 {dimension_numbers = #tpu.dot_dimension_numbers<[1], [0], [0], [1], [0, 0, 1, 1], [], []>} : vector<8x8xf32>, vector<8x8xf32>, vector<8x8xf32> -> vector<8x8xf32>
    %cst_48 = arith.constant 0.000000e+00 : f32
    %75 = vector.broadcast %cst_48 : f32 to vector<8x8xf32>
    %76 = arith.maximumf %74, %75 : vector<8x8xf32>
    %c0_49 = arith.constant 0 : index
    %c0_50 = arith.constant 0 : index
    %77 = vector.load %arg15[%c0_49, %c0_50] : memref<8x8xf32, #tpu.memory_space<vmem>>, vector<8x8xf32>
    %78 = arith.mulf %76, %77 : vector<8x8xf32>
    %cst_51 = arith.constant dense<0.000000e+00> : vector<8xf32>
    %79 = vector.multi_reduction <add>, %78, %cst_51 [1] : vector<8x8xf32> to vector<8xf32>
    %80 = vector.shape_cast %79 : vector<8xf32> to vector<8x1xf32>
    %c0_52 = arith.constant 0 : index
    %c0_53 = arith.constant 0 : index
    %81 = vector.load %arg16[%c0_52, %c0_53] : memref<2x8xf32, #tpu.memory_space<vmem>>, vector<2x8xf32>
    %cst_54 = arith.constant dense<0.000000e+00> : vector<2x1xf32>
    %82 = tpu.matmul %81, %80, %cst_54 {dimension_numbers = #tpu.dot_dimension_numbers<[1], [0], [0], [1], [0, 0, 1, 1], [], []>} : vector<2x8xf32>, vector<8x1xf32>, vector<2x1xf32> -> vector<2x1xf32>
    %c0_55 = arith.constant 0 : index
    %c0_56 = arith.constant 0 : index
    %83 = vector.load %arg17[%c0_55, %c0_56] : memref<1x1xf32, #tpu.memory_space<vmem>>, vector<1x1xf32>
    %84 = vector.broadcast %83 : vector<1x1xf32> to vector<2x1xf32>
    %85 = arith.addf %82, %84 : vector<2x1xf32>
    %cst_57 = arith.constant 0.000000e+00 : f32
    %86 = vector.broadcast %cst_57 : f32 to vector<2x1xf32>
    %87 = arith.subf %86, %85 : vector<2x1xf32>
    %88 = math.exp %87 : vector<2x1xf32>
    %cst_58 = arith.constant 1.000000e+00 : f32
    %89 = vector.broadcast %cst_58 : f32 to vector<2x1xf32>
    %90 = arith.addf %89, %88 : vector<2x1xf32>
    %cst_59 = arith.constant 1.000000e+00 : f32
    %91 = vector.broadcast %cst_59 : f32 to vector<2x1xf32>
    %92 = arith.divf %91, %90 : vector<2x1xf32>
    %c0_60 = arith.constant 0 : index
    %c0_61 = arith.constant 0 : index
    %93 = vector.load %arg18[%c0_60, %c0_61] : memref<2x1xf32, #tpu.memory_space<vmem>>, vector<2x1xf32>
    tpu.vector_store %arg18[%c0_60, %c0_61], %92 {strides = array<i32>} : memref<2x1xf32, #tpu.memory_space<vmem>>, vector<2x1xf32>,
    return
  }
}

</mosaic_0001>

<llo_original>
// kernel: tpu_custom_call.1
$region0: #{tpu_custom_call.1}
  #allocation0 [shape = 'u32[]', space=smem, size = 0x4, offset = 0x4, fixed_abs, tag = 'smem constant byte address 0x4 - core index']
  #allocation1 [shape = 'u32[144,128]{1,0:T(1,128)}', space=vmem, size = 0x12000, scoped, tag = 'internal scratch']
  #allocation2 [shape = 'f32[1,1]{1,0:T(1,128)S(1)}', space=vmem, size = 0x200, scoped, tag = 'scoped memory for tpu_custom_call.1']
  %s0 = inlined_call_operand.vmem [shape: f32[32,64], index: 0, kind: input, shape index: {}]
  %s1 = inlined_call_operand.vmem [shape: f32[64,668], index: 1, kind: input, shape index: {}]
  %s2 = inlined_call_operand.vmem [shape: f32[1,668], index: 2, kind: input, shape index: {}]
  %s3 = inlined_call_operand.vmem [shape: f32[668,152], index: 3, kind: input, shape index: {}]
  %s4 = inlined_call_operand.vmem [shape: f32[152,152], index: 4, kind: input, shape index: {}]
  %s5 = inlined_call_operand.vmem [shape: f32[1,152], index: 5, kind: input, shape index: {}]
  %s6 = inlined_call_operand.vmem [shape: f32[152,76], index: 6, kind: input, shape index: {}]
  %s7 = inlined_call_operand.vmem [shape: f32[1,76], index: 7, kind: input, shape index: {}]
  %s8 = inlined_call_operand.vmem [shape: f32[32,76], index: 8, kind: input, shape index: {}]
  %s9 = inlined_call_operand.vmem [shape: f32[32,1], index: 9, kind: input, shape index: {}]
  %s10 = inlined_call_operand.vmem [shape: f32[8,32], index: 10, kind: input, shape index: {}]
  %s11 = inlined_call_operand.vmem [shape: f32[8,8], index: 11, kind: input, shape index: {}]
  %s12 = inlined_call_operand.vmem [shape: f32[8,1], index: 12, kind: input, shape index: {}]
  %s13 = inlined_call_operand.vmem [shape: f32[76,8], index: 13, kind: input, shape index: {}]
  %s14 = inlined_call_operand.vmem [shape: f32[8,8], index: 14, kind: input, shape index: {}]
  %s15 = inlined_call_operand.vmem [shape: f32[8,8], index: 15, kind: input, shape index: {}]
  %s16 = inlined_call_operand.vmem [shape: f32[2,8], index: 16, kind: input, shape index: {}]
  %s17 = inlined_call_operand.<no memory space> [shape: f32[1,1], index: 17, kind: input, shape index: {}]
  %s18 = inlined_call_operand.vmem [shape: f32[2,1], index: 18, kind: output, shape index: {}]
  %s19 = sld [smem:[#allocation0]]
  $region82: #{tpu_custom_call.1} parent=0
    _
  %s21 = ssub.s32 1, %s19
  %s22 = scalar_select 0, %s21, %s19
  %v23 = vstv %s17
  %24 = vst [vmem:[#allocation2] sm:$0x1] %v23
  // Predicated region
  $region2: #{tpu_custom_call.1} parent=0 // pred_check
    _
  $region3: #{tpu_custom_call.1} parent=0 // pred_check_branch
    %26 = sbr.rel (0) target = $region5
  $region4: #{tpu_custom_call.1} parent=0 // pred_region
    _
  $region5: #{tpu_custom_call.1} parent=0 // pred_fallthru
    _
  // Predicated region
  $region6: #{tpu_custom_call.1} parent=0 // pred_check
    _
  $region7: #{tpu_custom_call.1} parent=0 // pred_check_branch
    %28 = sbr.rel (0) target = $region9
  $region8: #{tpu_custom_call.1} parent=0 // pred_region
    _
  $region9: #{tpu_custom_call.1} parent=0 // pred_fallthru
    _
  // Predicated region
  $region10: #{tpu_custom_call.1} parent=0 // pred_check
    _
  $region11: #{tpu_custom_call.1} parent=0 // pred_check_branch
    %30 = sbr.rel (0) target = $region13
  $region12: #{tpu_custom_call.1} parent=0 // pred_region
    _
  $region13: #{tpu_custom_call.1} parent=0 // pred_fallthru
    _
  // Predicated region
  $region14: #{tpu_custom_call.1} parent=0 // pred_check
    _
  $region15: #{tpu_custom_call.1} parent=0 // pred_check_branch
    %32 = sbr.rel (0) target = $region17
  $region16: #{tpu_custom_call.1} parent=0 // pred_region
    _
  $region17: #{tpu_custom_call.1} parent=0 // pred_fallthru
    _
  // Predicated region
  $region18: #{tpu_custom_call.1} parent=0 // pred_check
    _
  $region19: #{tpu_custom_call.1} parent=0 // pred_check_branch
    %34 = sbr.rel (0) target = $region21
  $region20: #{tpu_custom_call.1} parent=0 // pred_region
    _
  $region21: #{tpu_custom_call.1} parent=0 // pred_fallthru
    _
  // Predicated region
  $region22: #{tpu_custom_call.1} parent=0 // pred_check
    _
  $region23: #{tpu_custom_call.1} parent=0 // pred_check_branch
    %36 = sbr.rel (0) target = $region25
  $region24: #{tpu_custom_call.1} parent=0 // pred_region
    _
  $region25: #{tpu_custom_call.1} parent=0 // pred_fallthru
    _
  // Predicated region
  $region26: #{tpu_custom_call.1} parent=0 // pred_check
    _
  $region27: #{tpu_custom_call.1} parent=0 // pred_check_branch
    %38 = sbr.rel (0) target = $region29
  $region28: #{tpu_custom_call.1} parent=0 // pred_region
    _
  $region29: #{tpu_custom_call.1} parent=0 // pred_fallthru
    _
  // Predicated region
  $region30: #{tpu_custom_call.1} parent=0 // pred_check
    _
  $region31: #{tpu_custom_call.1} parent=0 // pred_check_branch
    %40 = sbr.rel (0) target = $region33
  $region32: #{tpu_custom_call.1} parent=0 // pred_region
    _
  $region33: #{tpu_custom_call.1} parent=0 // pred_fallthru
    _
  // Predicated region
  $region34: #{tpu_custom_call.1} parent=0 // pred_check
    _
  $region35: #{tpu_custom_call.1} parent=0 // pred_check_branch
    %42 = sbr.rel (0) target = $region37
  $region36: #{tpu_custom_call.1} parent=0 // pred_region
    _
  $region37: #{tpu_custom_call.1} parent=0 // pred_fallthru
    _
  // Predicated region
  $region38: #{tpu_custom_call.1} parent=0 // pred_check
    _
  $region39: #{tpu_custom_call.1} parent=0 // pred_check_branch
    %44 = sbr.rel (0) target = $region41
  $region40: #{tpu_custom_call.1} parent=0 // pred_region
    _
  $region41: #{tpu_custom_call.1} parent=0 // pred_fallthru
    _
  // Predicated region
  $region42: #{tpu_custom_call.1} parent=0 // pred_check
    _
  $region43: #{tpu_custom_call.1} parent=0 // pred_check_branch
    %46 = sbr.rel (0) target = $region45
  $region44: #{tpu_custom_call.1} parent=0 // pred_region
    _
  $region45: #{tpu_custom_call.1} parent=0 // pred_fallthru
    _
  // Predicated region
  $region46: #{tpu_custom_call.1} parent=0 // pred_check
    _
  $region47: #{tpu_custom_call.1} parent=0 // pred_check_branch
    %48 = sbr.rel (0) target = $region49
  $region48: #{tpu_custom_call.1} parent=0 // pred_region
    _
  $region49: #{tpu_custom_call.1} parent=0 // pred_fallthru
    _
  // Predicated region
  $region50: #{tpu_custom_call.1} parent=0 // pred_check
    _
  $region51: #{tpu_custom_call.1} parent=0 // pred_check_branch
    %50 = sbr.rel (0) target = $region53
  $region52: #{tpu_custom_call.1} parent=0 // pred_region
    _
  $region53: #{tpu_custom_call.1} parent=0 // pred_fallthru
    _
  // Predicated region
  $region54: #{tpu_custom_call.1} parent=0 // pred_check
    _
  $region55: #{tpu_custom_call.1} parent=0 // pred_check_branch
    %52 = sbr.rel (0) target = $region57
  $region56: #{tpu_custom_call.1} parent=0 // pred_region
    _
  $region57: #{tpu_custom_call.1} parent=0 // pred_fallthru
    _
  // Predicated region
  $region58: #{tpu_custom_call.1} parent=0 // pred_check
    _
  $region59: #{tpu_custom_call.1} parent=0 // pred_check_branch
    %54 = sbr.rel (0) target = $region61
  $region60: #{tpu_custom_call.1} parent=0 // pred_region
    _
  $region61: #{tpu_custom_call.1} parent=0 // pred_fallthru
    _
  // Predicated region
  $region62: #{tpu_custom_call.1} parent=0 // pred_check
    _
  $region63: #{tpu_custom_call.1} parent=0 // pred_check_branch
    %56 = sbr.rel (0) target = $region65
  $region64: #{tpu_custom_call.1} parent=0 // pred_region
    _
  $region65: #{tpu_custom_call.1} parent=0 // pred_fallthru
    _
  // Predicated region
  $region66: #{tpu_custom_call.1} parent=0 // pred_check
    _
  $region67: #{tpu_custom_call.1} parent=0 // pred_check_branch
    %58 = sbr.rel (0) target = $region69
  $region68: #{tpu_custom_call.1} parent=0 // pred_region
    _
  $region69: #{tpu_custom_call.1} parent=0 // pred_fallthru
    _
  // Predicated region
  $region70: #{tpu_custom_call.1} parent=0 // pred_check
    _
  $region71: #{tpu_custom_call.1} parent=0 // pred_check_branch
    %60 = sbr.rel (0) target = $region73
  $region72: #{tpu_custom_call.1} parent=0 // pred_region
    _
  $region73: #{tpu_custom_call.1} parent=0 // pred_fallthru
    _
  %v61 = vld [vmem:[%s0] sm:$0xff]
  %v62 = vld [vmem:[%s0 + $0x8] sm:$0xff]
  %v63 = vld [vmem:[%s0 + $0x10] sm:$0xff]
  %v64 = vld [vmem:[%s0 + $0x18] sm:$0xff]
  %v65 = vld [vmem:[%s1] sm:$0xff]
  %v66 = vld [vmem:[%s1 + $0x8] sm:$0xff]
  %v67 = vld [vmem:[%s1 + $0x10] sm:$0xff]
  %v68 = vld [vmem:[%s1 + $0x18] sm:$0xff]
  %v69 = vld [vmem:[%s1 + $0x20] sm:$0xff]
  %v70 = vld [vmem:[%s1 + $0x28] sm:$0xff]
  %v71 = vld [vmem:[%s1 + $0x30] sm:$0xff]
  %v72 = vld [vmem:[%s1 + $0x38] sm:$0xff]
  %v73 = vld [vmem:[%s1 + $0x40] sm:$0xff]
  %v74 = vld [vmem:[%s1 + $0x48] sm:$0xff]
  %v75 = vld [vmem:[%s1 + $0x50] sm:$0xff]
  %v76 = vld [vmem:[%s1 + $0x58] sm:$0xff]
  %v77 = vld [vmem:[%s1 + $0x60] sm:$0xff]
  %v78 = vld [vmem:[%s1 + $0x68] sm:$0xff]
  %v79 = vld [vmem:[%s1 + $0x70] sm:$0xff]
  %v80 = vld [vmem:[%s1 + $0x78] sm:$0xff]
  %v81 = vld [vmem:[%s1 + $0x80] sm:$0xff]
  %v82 = vld [vmem:[%s1 + $0x88] sm:$0xff]
  %v83 = vld [vmem:[%s1 + $0x90] sm:$0xff]
  %v84 = vld [vmem:[%s1 + $0x98] sm:$0xff]
  %v85 = vld [vmem:[%s1 + $0xa0] sm:$0xff]
  %v86 = vld [vmem:[%s1 + $0xa8] sm:$0xff]
  %v87 = vld [vmem:[%s1 + $0xb0] sm:$0xff]
  %v88 = vld [vmem:[%s1 + $0xb8] sm:$0xff]
  %v89 = vld [vmem:[%s1 + $0xc0] sm:$0xff]
  %v90 = vld [vmem:[%s1 + $0xc8] sm:$0xff]
  %v91 = vld [vmem:[%s1 + $0xd0] sm:$0xff]
  %v92 = vld [vmem:[%s1 + $0xd8] sm:$0xff]
  %v93 = vld [vmem:[%s1 + $0xe0] sm:$0xff]
  %v94 = vld [vmem:[%s1 + $0xe8] sm:$0xff]
  %v95 = vld [vmem:[%s1 + $0xf0] sm:$0xff]
  %v96 = vld [vmem:[%s1 + $0xf8] sm:$0xff]
  %v97 = vld [vmem:[%s1 + $0x100] sm:$0xff]
  %v98 = vld [vmem:[%s1 + $0x108] sm:$0xff]
  %v99 = vld [vmem:[%s1 + $0x110] sm:$0xff]
  %v100 = vld [vmem:[%s1 + $0x118] sm:$0xff]
  %v101 = vld [vmem:[%s1 + $0x120] sm:$0xff]
  %v102 = vld [vmem:[%s1 + $0x128] sm:$0xff]
  %v103 = vld [vmem:[%s1 + $0x130] sm:$0xff]
  %v104 = vld [vmem:[%s1 + $0x138] sm:$0xff]
  %v105 = vld [vmem:[%s1 + $0x140] sm:$0xff]
  %v106 = vld [vmem:[%s1 + $0x148] sm:$0xff]
  %v107 = vld [vmem:[%s1 + $0x150] sm:$0xff]
  %v108 = vld [vmem:[%s1 + $0x158] sm:$0xff]
  %v109 = vld [vmem:[%s1 + $0x160] sm:$0xff]
  %v110 = vld [vmem:[%s1 + $0x168] sm:$0xff]
  %v111 = vld [vmem:[%s1 + $0x170] sm:$0xff]
  %v112 = vld [vmem:[%s1 + $0x178] sm:$0xff]
  %v113 = vld [vmem:[%s2] sm:$0x3f]
  %v115 = vlaneseq
  %v116 = vshrl.u32 %v115, 7
  %v117 = vsub.s32 0, %v116
  %v118 = vrot.slane %v113, %v117
  %v119 = vlaneseq
  %v120 = vshrl.u32 %v119, 7
  %v121 = vsub.s32 1, %v120
  %v122 = vrot.slane %v113, %v121
  %v123 = vlaneseq
  %v124 = vshrl.u32 %v123, 7
  %v125 = vsub.s32 2, %v124
  %v126 = vrot.slane %v113, %v125
  %v127 = vlaneseq
  %v128 = vshrl.u32 %v127, 7
  %v129 = vsub.s32 3, %v128
  %v130 = vrot.slane %v113, %v129
  %v131 = vlaneseq
  %v132 = vshrl.u32 %v131, 7
  %v133 = vsub.s32 4, %v132
  %v134 = vrot.slane %v113, %v133
  %v135 = vlaneseq
  %v136 = vshrl.u32 %v135, 7
  %v137 = vsub.s32 5, %v136
  %v138 = vrot.slane %v113, %v137
  %vm145 = vcmask 523264
  %v147 = vsel %vm145, %v61, 0
  %v150 = vsel %vm145, %v62, 0
  %v153 = vsel %vm145, %v63, 0
  %v156 = vsel %vm145, %v64, 0
  %158 = vmatprep.subr.mxu0 %v66
  %159 = vmatpush1.msra.mxu0 %v65
  %160 = vmatprep.subr.mxu0 %v72
  %161 = vmatpush1.msra.mxu0 %v71
  %162 = vmatprep.subr.mxu0 %v78
  %163 = vmatpush1.msra.mxu0 %v77
  %164 = vmatprep.subr.mxu0 %v84
  %165 = vmatpush1.msra.mxu0 %v83
  %166 = vmatprep.subr.mxu0 %v90
  %167 = vmatpush1.msra.mxu0 %v89
  %168 = vmatprep.subr.mxu0 %v96
  %169 = vmatpush1.msra.mxu0 %v95
  %170 = vmatprep.subr.mxu0 %v102
  %171 = vmatpush1.msra.mxu0 %v101
  %172 = vmatprep.subr.mxu0 %v108
  %173 = vmatpush1.msra.mxu0 %v107
  %174 = vmatprep.subr.mxu0 0.0
  %175 = vmatpush1.msra.mxu0 0.0
  %176 = vmatprep.subr.mxu0 0.0
  %177 = vmatpush1.msra.mxu0 0.0
  %178 = vmatprep.subr.mxu0 0.0
  %179 = vmatpush1.msra.mxu0 0.0
  %180 = vmatprep.subr.mxu0 0.0
  %181 = vmatpush1.msra.mxu0 0.0
  %182 = vmatprep.subr.mxu0 0.0
  %183 = vmatpush1.msra.mxu0 0.0
  %184 = vmatprep.subr.mxu0 0.0
  %185 = vmatpush1.msra.mxu0 0.0
  %186 = vmatprep.subr.mxu0 0.0
  %187 = vmatpush1.msra.mxu0 0.0
  %188 = vmatprep.subr.mxu0 0.0
  %189 = vmatpush1.msra.mxu0 0.0
  %190 = vmatprep.subr.mxu0 0.0
  %191 = vmatpush1.msra.mxu0 0.0
  %192 = vmatprep.subr.mxu0 0.0
  %193 = vmatpush1.msra.mxu0 0.0
  %194 = vmatprep.subr.mxu0 0.0
  %195 = vmatpush1.msra.mxu0 0.0
  %196 = vmatprep.subr.mxu0 0.0
  %197 = vmatpush1.msra.mxu0 0.0
  %198 = vmatprep.subr.mxu0 0.0
  %199 = vmatpush1.msra.mxu0 0.0
  %200 = vmatprep.subr.mxu0 0.0
  %201 = vmatpush1.msra.mxu0 0.0
  %202 = vmatprep.subr.mxu0 0.0
  %203 = vmatpush1.msra.mxu0 0.0
  %204 = vmatprep.subr.mxu0 0.0
  %205 = vmatpush1.msra.mxu0 0.0
  %206 = vmatprep.subr.mxu0 0.0
  %207 = vmatpush1.msra.mxu0 0.0
  %208 = vmatprep.subr.mxu0 0.0
  %209 = vmatpush1.msra.mxu0 0.0
  %210 = vmatprep.subr.mxu0 0.0
  %211 = vmatpush1.msra.mxu0 0.0
  %212 = vmatprep.subr.mxu0 0.0
  %213 = vmatpush1.msra.mxu0 0.0
  %214 = vmatprep.subr.mxu0 0.0
  %215 = vmatpush1.msra.mxu0 0.0
  %216 = vmatprep.subr.mxu0 0.0
  %217 = vmatpush1.msra.mxu0 0.0
  %218 = vmatprep.subr.mxu0 0.0
  %219 = vmatpush1.msra.mxu0 0.0
  %220 = vmatprep.subr.mxu0 0.0
  %221 = vmatpush1.msra.mxu0 0.0
  %222 = vmatprep.mubr.f32.mxu0 0.0
  %223 = vmatmul.mubr.f32.gmra.mrb[0].mxu0 %v147
  %v224 = vpop.f32.mrb[0].mxu0
  %v225 = vadd.f32 %v118, %v224
  %v226 = vpop.f32.mrb[0].mxu0
  %v227 = vadd.f32 %v122, %v226
  %228 = vmatprep.mubr.f32.mxu0 0.0
  %229 = vmatmul.mubr.f32.gmra.mrb[0].mxu0 %v150
  %v230 = vpop.f32.mrb[0].mxu0
  %v231 = vadd.f32 %v118, %v230
  %v232 = vpop.f32.mrb[0].mxu0
  %v233 = vadd.f32 %v122, %v232
  %234 = vmatprep.mubr.f32.mxu0 0.0
  %235 = vmatmul.mubr.f32.gmra.mrb[0].mxu0 %v153
  %v236 = vpop.f32.mrb[0].mxu0
  %v237 = vadd.f32 %v118, %v236
  %v238 = vpop.f32.mrb[0].mxu0
  %v239 = vadd.f32 %v122, %v238
  %240 = vmatprep.mubr.f32.mxu0 0.0
  %241 = vmatmul.mubr.f32.gmra.mrb[0].mxu0 %v156
  %v242 = vpop.f32.mrb[0].mxu0
  %v243 = vadd.f32 %v118, %v242
  %v244 = vpop.f32.mrb[0].mxu0
  %v245 = vadd.f32 %v122, %v244
  %246 = vdwg.mxu0
  %247 = vmatprep.subr.mxu0 %v68
  %248 = vmatpush1.msra.mxu0 %v67
  %249 = vmatprep.subr.mxu0 %v74
  %250 = vmatpush1.msra.mxu0 %v73
  %251 = vmatprep.subr.mxu0 %v80
  %252 = vmatpush1.msra.mxu0 %v79
  %253 = vmatprep.subr.mxu0 %v86
  %254 = vmatpush1.msra.mxu0 %v85
  %255 = vmatprep.subr.mxu0 %v92
  %256 = vmatpush1.msra.mxu0 %v91
  %257 = vmatprep.subr.mxu0 %v98
  %258 = vmatpush1.msra.mxu0 %v97
  %259 = vmatprep.subr.mxu0 %v104
  %260 = vmatpush1.msra.mxu0 %v103
  %261 = vmatprep.subr.mxu0 %v110
  %262 = vmatpush1.msra.mxu0 %v109
  %263 = vmatprep.subr.mxu0 0.0
  %264 = vmatpush1.msra.mxu0 0.0
  %265 = vmatprep.subr.mxu0 0.0
  %266 = vmatpush1.msra.mxu0 0.0
  %267 = vmatprep.subr.mxu0 0.0
  %268 = vmatpush1.msra.mxu0 0.0
  %269 = vmatprep.subr.mxu0 0.0
  %270 = vmatpush1.msra.mxu0 0.0
  %271 = vmatprep.subr.mxu0 0.0
  %272 = vmatpush1.msra.mxu0 0.0
  %273 = vmatprep.subr.mxu0 0.0
  %274 = vmatpush1.msra.mxu0 0.0
  %275 = vmatprep.subr.mxu0 0.0
  %276 = vmatpush1.msra.mxu0 0.0
  %277 = vmatprep.subr.mxu0 0.0
  %278 = vmatpush1.msra.mxu0 0.0
  %279 = vmatprep.subr.mxu0 0.0
  %280 = vmatpush1.msra.mxu0 0.0
  %281 = vmatprep.subr.mxu0 0.0
  %282 = vmatpush1.msra.mxu0 0.0
  %283 = vmatprep.subr.mxu0 0.0
  %284 = vmatpush1.msra.mxu0 0.0
  %285 = vmatprep.subr.mxu0 0.0
  %286 = vmatpush1.msra.mxu0 0.0
  %287 = vmatprep.subr.mxu0 0.0
  %288 = vmatpush1.msra.mxu0 0.0
  %289 = vmatprep.subr.mxu0 0.0
  %290 = vmatpush1.msra.mxu0 0.0
  %291 = vmatprep.subr.mxu0 0.0
  %292 = vmatpush1.msra.mxu0 0.0
  %293 = vmatprep.subr.mxu0 0.0
  %294 = vmatpush1.msra.mxu0 0.0
  %295 = vmatprep.subr.mxu0 0.0
  %296 = vmatpush1.msra.mxu0 0.0
  %297 = vmatprep.subr.mxu0 0.0
  %298 = vmatpush1.msra.mxu0 0.0
  %299 = vmatprep.subr.mxu0 0.0
  %300 = vmatpush1.msra.mxu0 0.0
  %301 = vmatprep.subr.mxu0 0.0
  %302 = vmatpush1.msra.mxu0 0.0
  %303 = vmatprep.subr.mxu0 0.0
  %304 = vmatpush1.msra.mxu0 0.0
  %305 = vmatprep.subr.mxu0 0.0
  %306 = vmatpush1.msra.mxu0 0.0
  %307 = vmatprep.subr.mxu0 0.0
  %308 = vmatpush1.msra.mxu0 0.0
  %309 = vmatprep.subr.mxu0 0.0
  %310 = vmatpush1.msra.mxu0 0.0
  %311 = vmatprep.mubr.f32.mxu0 0.0
  %312 = vmatmul.mubr.f32.gmra.mrb[0].mxu0 %v147
  %v313 = vpop.f32.mrb[0].mxu0
  %v314 = vadd.f32 %v126, %v313
  %v315 = vpop.f32.mrb[0].mxu0
  %v316 = vadd.f32 %v130, %v315
  %317 = vmatprep.mubr.f32.mxu0 0.0
  %318 = vmatmul.mubr.f32.gmra.mrb[0].mxu0 %v150
  %v319 = vpop.f32.mrb[0].mxu0
  %v320 = vadd.f32 %v126, %v319
  %v321 = vpop.f32.mrb[0].mxu0
  %v322 = vadd.f32 %v130, %v321
  %323 = vmatprep.mubr.f32.mxu0 0.0
  %324 = vmatmul.mubr.f32.gmra.mrb[0].mxu0 %v153
  %v325 = vpop.f32.mrb[0].mxu0
  %v326 = vadd.f32 %v126, %v325
  %v327 = vpop.f32.mrb[0].mxu0
  %v328 = vadd.f32 %v130, %v327
  %329 = vmatprep.mubr.f32.mxu0 0.0
  %330 = vmatmul.mubr.f32.gmra.mrb[0].mxu0 %v156
  %v331 = vpop.f32.mrb[0].mxu0
  %v332 = vadd.f32 %v126, %v331
  %v333 = vpop.f32.mrb[0].mxu0
  %v334 = vadd.f32 %v130, %v333
  %335 = vdwg.mxu0
  %336 = vmatprep.subr.mxu0 %v70
  %337 = vmatpush1.msra.mxu0 %v69
  %338 = vmatprep.subr.mxu0 %v76
  %339 = vmatpush1.msra.mxu0 %v75
  %340 = vmatprep.subr.mxu0 %v82
  %341 = vmatpush1.msra.mxu0 %v81
  %342 = vmatprep.subr.mxu0 %v88
  %343 = vmatpush1.msra.mxu0 %v87
  %344 = vmatprep.subr.mxu0 %v94
  %345 = vmatpush1.msra.mxu0 %v93
  %346 = vmatprep.subr.mxu0 %v100
  %347 = vmatpush1.msra.mxu0 %v99
  %348 = vmatprep.subr.mxu0 %v106
  %349 = vmatpush1.msra.mxu0 %v105
  %350 = vmatprep.subr.mxu0 %v112
  %351 = vmatpush1.msra.mxu0 %v111
  %352 = vmatprep.subr.mxu0 0.0
  %353 = vmatpush1.msra.mxu0 0.0
  %354 = vmatprep.subr.mxu0 0.0
  %355 = vmatpush1.msra.mxu0 0.0
  %356 = vmatprep.subr.mxu0 0.0
  %357 = vmatpush1.msra.mxu0 0.0
  %358 = vmatprep.subr.mxu0 0.0
  %359 = vmatpush1.msra.mxu0 0.0
  %360 = vmatprep.subr.mxu0 0.0
  %361 = vmatpush1.msra.mxu0 0.0
  %362 = vmatprep.subr.mxu0 0.0
  %363 = vmatpush1.msra.mxu0 0.0
  %364 = vmatprep.subr.mxu0 0.0
  %365 = vmatpush1.msra.mxu0 0.0
  %366 = vmatprep.subr.mxu0 0.0
  %367 = vmatpush1.msra.mxu0 0.0
  %368 = vmatprep.subr.mxu0 0.0
  %369 = vmatpush1.msra.mxu0 0.0
  %370 = vmatprep.subr.mxu0 0.0
  %371 = vmatpush1.msra.mxu0 0.0
  %372 = vmatprep.subr.mxu0 0.0
  %373 = vmatpush1.msra.mxu0 0.0
  %374 = vmatprep.subr.mxu0 0.0
  %375 = vmatpush1.msra.mxu0 0.0
  %376 = vmatprep.subr.mxu0 0.0
  %377 = vmatpush1.msra.mxu0 0.0
  %378 = vmatprep.subr.mxu0 0.0
  %379 = vmatpush1.msra.mxu0 0.0
  %380 = vmatprep.subr.mxu0 0.0
  %381 = vmatpush1.msra.mxu0 0.0
  %382 = vmatprep.subr.mxu0 0.0
  %383 = vmatpush1.msra.mxu0 0.0
  %384 = vmatprep.subr.mxu0 0.0
  %385 = vmatpush1.msra.mxu0 0.0
  %386 = vmatprep.subr.mxu0 0.0
  %387 = vmatpush1.msra.mxu0 0.0
  %388 = vmatprep.subr.mxu0 0.0
  %389 = vmatpush1.msra.mxu0 0.0
  %390 = vmatprep.subr.mxu0 0.0
  %391 = vmatpush1.msra.mxu0 0.0
  %392 = vmatprep.subr.mxu0 0.0
  %393 = vmatpush1.msra.mxu0 0.0
  %394 = vmatprep.subr.mxu0 0.0
  %395 = vmatpush1.msra.mxu0 0.0
  %396 = vmatprep.subr.mxu0 0.0
  %397 = vmatpush1.msra.mxu0 0.0
  %398 = vmatprep.subr.mxu0 0.0
  %399 = vmatpush1.msra.mxu0 0.0
  %400 = vmatprep.mubr.f32.mxu0 0.0
  %401 = vmatmul.mubr.f32.gmra.mrb[0].mxu0 %v147
  %v402 = vpop.f32.mrb[0].mxu0
  %v403 = vadd.f32 %v134, %v402
  %v404 = vpop.f32.mrb[0].mxu0
  %v405 = vadd.f32 %v138, %v404
  %406 = vmatprep.mubr.f32.mxu0 0.0
  %407 = vmatmul.mubr.f32.gmra.mrb[0].mxu0 %v150
  %v408 = vpop.f32.mrb[0].mxu0
  %v409 = vadd.f32 %v134, %v408
  %v410 = vpop.f32.mrb[0].mxu0
  %v411 = vadd.f32 %v138, %v410
  %412 = vmatprep.mubr.f32.mxu0 0.0
  %413 = vmatmul.mubr.f32.gmra.mrb[0].mxu0 %v153
  %v414 = vpop.f32.mrb[0].mxu0
  %v415 = vadd.f32 %v134, %v414
  %v416 = vpop.f32.mrb[0].mxu0
  %v417 = vadd.f32 %v138, %v416
  %418 = vmatprep.mubr.f32.mxu0 0.0
  %419 = vmatmul.mubr.f32.gmra.mrb[0].mxu0 %v156
  %v420 = vpop.f32.mrb[0].mxu0
  %v421 = vadd.f32 %v134, %v420
  %v422 = vpop.f32.mrb[0].mxu0
  %v423 = vadd.f32 %v138, %v422
  %424 = vdwg.mxu0
  %v425 = vmul.f32 %v225, %v225
  %v426 = vmul.f32 %v227, %v227
  %v427 = vmul.f32 %v314, %v314
  %v428 = vmul.f32 %v316, %v316
  %v429 = vmul.f32 %v403, %v403
  %v430 = vmul.f32 %v405, %v405
  %v431 = vmul.f32 %v231, %v231
  %v432 = vmul.f32 %v233, %v233
  %v433 = vmul.f32 %v320, %v320
  %v434 = vmul.f32 %v322, %v322
  %v435 = vmul.f32 %v409, %v409
  %v436 = vmul.f32 %v411, %v411
  %v437 = vmul.f32 %v237, %v237
  %v438 = vmul.f32 %v239, %v239
  %v439 = vmul.f32 %v326, %v326
  %v440 = vmul.f32 %v328, %v328
  %v441 = vmul.f32 %v415, %v415
  %v442 = vmul.f32 %v417, %v417
  %v443 = vmul.f32 %v243, %v243
  %v444 = vmul.f32 %v245, %v245
  %v445 = vmul.f32 %v332, %v332
  %v446 = vmul.f32 %v334, %v334
  %v447 = vmul.f32 %v421, %v421
  %v448 = vmul.f32 %v423, %v423
  %v449 = vld [vmem:[%s3] sm:$0xff]
  %v450 = vld [vmem:[%s3 + $0x8] sm:$0xff]
  %v451 = vld [vmem:[%s3 + $0x10] sm:$0xff]
  %v452 = vld [vmem:[%s3 + $0x18] sm:$0xff]
  %v453 = vld [vmem:[%s3 + $0x20] sm:$0xff]
  %v454 = vld [vmem:[%s3 + $0x28] sm:$0xff]
  %v455 = vld [vmem:[%s3 + $0x30] sm:$0xff]
  %v456 = vld [vmem:[%s3 + $0x38] sm:$0xff]
  %v457 = vld [vmem:[%s3 + $0x40] sm:$0xff]
  %v458 = vld [vmem:[%s3 + $0x48] sm:$0xff]
  %v459 = vld [vmem:[%s3 + $0x50] sm:$0xff]
  %v460 = vld [vmem:[%s3 + $0x58] sm:$0xff]
  %v461 = vld [vmem:[%s3 + $0x60] sm:$0xff]
  %v462 = vld [vmem:[%s3 + $0x68] sm:$0xff]
  %v463 = vld [vmem:[%s3 + $0x70] sm:$0xff]
  %v464 = vld [vmem:[%s3 + $0x78] sm:$0xff]
  %v465 = vld [vmem:[%s3 + $0x80] sm:$0xff]
  %v466 = vld [vmem:[%s3 + $0x88] sm:$0xff]
  %v467 = vld [vmem:[%s3 + $0x90] sm:$0xff]
  %v468 = vld [vmem:[%s3 + $0x98] sm:$0xff]
  %v469 = vld [vmem:[%s3 + $0xa0] sm:$0xff]
  %v470 = vld [vmem:[%s3 + $0xa8] sm:$0xff]
  %v471 = vld [vmem:[%s3 + $0xb0] sm:$0xff]
  %v472 = vld [vmem:[%s3 + $0xb8] sm:$0xff]
  %v473 = vld [vmem:[%s3 + $0xc0] sm:$0xff]
  %v474 = vld [vmem:[%s3 + $0xc8] sm:$0xff]
  %v475 = vld [vmem:[%s3 + $0xd0] sm:$0xff]
  %v476 = vld [vmem:[%s3 + $0xd8] sm:$0xff]
  %v477 = vld [vmem:[%s3 + $0xe0] sm:$0xff]
  %v478 = vld [vmem:[%s3 + $0xe8] sm:$0xff]
  %v479 = vld [vmem:[%s3 + $0xf0] sm:$0xff]
  %v480 = vld [vmem:[%s3 + $0xf8] sm:$0xff]
  %v481 = vld [vmem:[%s3 + $0x100] sm:$0xff]
  %v482 = vld [vmem:[%s3 + $0x108] sm:$0xff]
  %v483 = vld [vmem:[%s3 + $0x110] sm:$0xff]
  %v484 = vld [vmem:[%s3 + $0x118] sm:$0xff]
  %v485 = vld [vmem:[%s3 + $0x120] sm:$0xff]
  %v486 = vld [vmem:[%s3 + $0x128] sm:$0xff]
  %v487 = vld [vmem:[%s3 + $0x130] sm:$0xff]
  %v488 = vld [vmem:[%s3 + $0x138] sm:$0xff]
  %v489 = vld [vmem:[%s3 + $0x140] sm:$0xff]
  %v490 = vld [vmem:[%s3 + $0x148] sm:$0xff]
  %v491 = vld [vmem:[%s3 + $0x150] sm:$0xff]
  %v492 = vld [vmem:[%s3 + $0x158] sm:$0xff]
  %v493 = vld [vmem:[%s3 + $0x160] sm:$0xff]
  %v494 = vld [vmem:[%s3 + $0x168] sm:$0xff]
  %v495 = vld [vmem:[%s3 + $0x170] sm:$0xff]
  %v496 = vld [vmem:[%s3 + $0x178] sm:$0xff]
  %v497 = vld [vmem:[%s3 + $0x180] sm:$0xff]
  %v498 = vld [vmem:[%s3 + $0x188] sm:$0xff]
  %v499 = vld [vmem:[%s3 + $0x190] sm:$0xff]
  %v500 = vld [vmem:[%s3 + $0x198] sm:$0xff]
  %v501 = vld [vmem:[%s3 + $0x1a0] sm:$0xff]
  %v502 = vld [vmem:[%s3 + $0x1a8] sm:$0xff]
  %v503 = vld [vmem:[%s3 + $0x1b0] sm:$0xff]
  %v504 = vld [vmem:[%s3 + $0x1b8] sm:$0xff]
  %v505 = vld [vmem:[%s3 + $0x1c0] sm:$0xff]
  %v506 = vld [vmem:[%s3 + $0x1c8] sm:$0xff]
  %v507 = vld [vmem:[%s3 + $0x1d0] sm:$0xff]
  %v508 = vld [vmem:[%s3 + $0x1d8] sm:$0xff]
  %v509 = vld [vmem:[%s3 + $0x1e0] sm:$0xff]
  %v510 = vld [vmem:[%s3 + $0x1e8] sm:$0xff]
  %v511 = vld [vmem:[%s3 + $0x1f0] sm:$0xff]
  %v512 = vld [vmem:[%s3 + $0x1f8] sm:$0xff]
  %v513 = vld [vmem:[%s3 + $0x200] sm:$0xff]
  %v514 = vld [vmem:[%s3 + $0x208] sm:$0xff]
  %v515 = vld [vmem:[%s3 + $0x210] sm:$0xff]
  %v516 = vld [vmem:[%s3 + $0x218] sm:$0xff]
  %v517 = vld [vmem:[%s3 + $0x220] sm:$0xff]
  %v518 = vld [vmem:[%s3 + $0x228] sm:$0xff]
  %v519 = vld [vmem:[%s3 + $0x230] sm:$0xff]
  %v520 = vld [vmem:[%s3 + $0x238] sm:$0xff]
  %v521 = vld [vmem:[%s3 + $0x240] sm:$0xff]
  %v522 = vld [vmem:[%s3 + $0x248] sm:$0xff]
  %v523 = vld [vmem:[%s3 + $0x250] sm:$0xff]
  %v524 = vld [vmem:[%s3 + $0x258] sm:$0xff]
  %v525 = vld [vmem:[%s3 + $0x260] sm:$0xff]
  %v526 = vld [vmem:[%s3 + $0x268] sm:$0xff]
  %v527 = vld [vmem:[%s3 + $0x270] sm:$0xff]
  %v528 = vld [vmem:[%s3 + $0x278] sm:$0xff]
  %v529 = vld [vmem:[%s3 + $0x280] sm:$0xff]
  %v530 = vld [vmem:[%s3 + $0x288] sm:$0xff]
  %v531 = vld [vmem:[%s3 + $0x290] sm:$0xff]
  %v532 = vld [vmem:[%s3 + $0x298] sm:$0xff]
  %v533 = vld [vmem:[%s3 + $0x2a0] sm:$0xff]
  %v534 = vld [vmem:[%s3 + $0x2a8] sm:$0xff]
  %v535 = vld [vmem:[%s3 + $0x2b0] sm:$0xff]
  %v536 = vld [vmem:[%s3 + $0x2b8] sm:$0xff]
  %v537 = vld [vmem:[%s3 + $0x2c0] sm:$0xff]
  %v538 = vld [vmem:[%s3 + $0x2c8] sm:$0xff]
  %v539 = vld [vmem:[%s3 + $0x2d0] sm:$0xff]
  %v540 = vld [vmem:[%s3 + $0x2d8] sm:$0xff]
  %v541 = vld [vmem:[%s3 + $0x2e0] sm:$0xff]
  %v542 = vld [vmem:[%s3 + $0x2e8] sm:$0xff]
  %v543 = vld [vmem:[%s3 + $0x2f0] sm:$0xff]
  %v544 = vld [vmem:[%s3 + $0x2f8] sm:$0xff]
  %v545 = vld [vmem:[%s3 + $0x300] sm:$0xff]
  %v546 = vld [vmem:[%s3 + $0x308] sm:$0xff]
  %v547 = vld [vmem:[%s3 + $0x310] sm:$0xff]
  %v548 = vld [vmem:[%s3 + $0x318] sm:$0xff]
  %v549 = vld [vmem:[%s3 + $0x320] sm:$0xff]
  %v550 = vld [vmem:[%s3 + $0x328] sm:$0xff]
  %v551 = vld [vmem:[%s3 + $0x330] sm:$0xff]
  %v552 = vld [vmem:[%s3 + $0x338] sm:$0xff]
  %v553 = vld [vmem:[%s3 + $0x340] sm:$0xff]
  %v554 = vld [vmem:[%s3 + $0x348] sm:$0xff]
  %v555 = vld [vmem:[%s3 + $0x350] sm:$0xff]
  %v556 = vld [vmem:[%s3 + $0x358] sm:$0xff]
  %v557 = vld [vmem:[%s3 + $0x360] sm:$0xff]
  %v558 = vld [vmem:[%s3 + $0x368] sm:$0xff]
  %v559 = vld [vmem:[%s3 + $0x370] sm:$0xff]
  %v560 = vld [vmem:[%s3 + $0x378] sm:$0xff]
  %v561 = vld [vmem:[%s3 + $0x380] sm:$0xff]
  %v562 = vld [vmem:[%s3 + $0x388] sm:$0xff]
  %v563 = vld [vmem:[%s3 + $0x390] sm:$0xff]
  %v564 = vld [vmem:[%s3 + $0x398] sm:$0xff]
  %v565 = vld [vmem:[%s3 + $0x3a0] sm:$0xff]
  %v566 = vld [vmem:[%s3 + $0x3a8] sm:$0xff]
  %v567 = vld [vmem:[%s3 + $0x3b0] sm:$0xff]
  %v568 = vld [vmem:[%s3 + $0x3b8] sm:$0xff]
  %v569 = vld [vmem:[%s3 + $0x3c0] sm:$0xff]
  %v570 = vld [vmem:[%s3 + $0x3c8] sm:$0xff]
  %v571 = vld [vmem:[%s3 + $0x3d0] sm:$0xff]
  %v572 = vld [vmem:[%s3 + $0x3d8] sm:$0xff]
  %v573 = vld [vmem:[%s3 + $0x3e0] sm:$0xff]
  %v574 = vld [vmem:[%s3 + $0x3e8] sm:$0xff]
  %v575 = vld [vmem:[%s3 + $0x3f0] sm:$0xff]
  %v576 = vld [vmem:[%s3 + $0x3f8] sm:$0xff]
  %v577 = vld [vmem:[%s3 + $0x400] sm:$0xff]
  %v578 = vld [vmem:[%s3 + $0x408] sm:$0xff]
  %v579 = vld [vmem:[%s3 + $0x410] sm:$0xff]
  %v580 = vld [vmem:[%s3 + $0x418] sm:$0xff]
  %v581 = vld [vmem:[%s3 + $0x420] sm:$0xff]
  %v582 = vld [vmem:[%s3 + $0x428] sm:$0xff]
  %v583 = vld [vmem:[%s3 + $0x430] sm:$0xff]
  %v584 = vld [vmem:[%s3 + $0x438] sm:$0xff]
  %v585 = vld [vmem:[%s3 + $0x440] sm:$0xff]
  %v586 = vld [vmem:[%s3 + $0x448] sm:$0xff]
  %v587 = vld [vmem:[%s3 + $0x450] sm:$0xff]
  %v588 = vld [vmem:[%s3 + $0x458] sm:$0xff]
  %v589 = vld [vmem:[%s3 + $0x460] sm:$0xff]
  %v590 = vld [vmem:[%s3 + $0x468] sm:$0xff]
  %v591 = vld [vmem:[%s3 + $0x470] sm:$0xff]
  %v592 = vld [vmem:[%s3 + $0x478] sm:$0xff]
  %v593 = vld [vmem:[%s3 + $0x480] sm:$0xff]
  %v594 = vld [vmem:[%s3 + $0x488] sm:$0xff]
  %v595 = vld [vmem:[%s3 + $0x490] sm:$0xff]
  %v596 = vld [vmem:[%s3 + $0x498] sm:$0xff]
  %v597 = vld [vmem:[%s3 + $0x4a0] sm:$0xff]
  %v598 = vld [vmem:[%s3 + $0x4a8] sm:$0xff]
  %v599 = vld [vmem:[%s3 + $0x4b0] sm:$0xff]
  %v600 = vld [vmem:[%s3 + $0x4b8] sm:$0xff]
  %v601 = vld [vmem:[%s3 + $0x4c0] sm:$0xff]
  %v602 = vld [vmem:[%s3 + $0x4c8] sm:$0xff]
  %v603 = vld [vmem:[%s3 + $0x4d0] sm:$0xff]
  %v604 = vld [vmem:[%s3 + $0x4d8] sm:$0xff]
  %v605 = vld [vmem:[%s3 + $0x4e0] sm:$0xff]
  %v606 = vld [vmem:[%s3 + $0x4e8] sm:$0xff]
  %v607 = vld [vmem:[%s3 + $0x4f0] sm:$0xff]
  %v608 = vld [vmem:[%s3 + $0x4f8] sm:$0xff]
  %v609 = vld [vmem:[%s3 + $0x500] sm:$0xff]
  %v610 = vld [vmem:[%s3 + $0x508] sm:$0xff]
  %v611 = vld [vmem:[%s3 + $0x510] sm:$0xff]
  %v612 = vld [vmem:[%s3 + $0x518] sm:$0xff]
  %v613 = vld [vmem:[%s3 + $0x520] sm:$0xff]
  %v614 = vld [vmem:[%s3 + $0x528] sm:$0xff]
  %v615 = vld [vmem:[%s3 + $0x530] sm:$0xf]
  %v616 = vld [vmem:[%s3 + $0x538] sm:$0xf]
  %vm617 = vcmask 228352
  %v619 = vsel %vm617, %v430, 0
  %v622 = vsel %vm617, %v436, 0
  %v625 = vsel %vm617, %v442, 0
  %v628 = vsel %vm617, %v448, 0
  %vm630 = vcmask 1043456
  %v632 = vsel %vm630, %v615, 0
  %v635 = vsel %vm630, %v616, 0
  %637 = vmatprep.subr.mxu0 %v450
  %638 = vmatpush1.msra.mxu0 %v449
  %639 = vmatprep.subr.mxu0 %v452
  %640 = vmatpush1.msra.mxu0 %v451
  %641 = vmatprep.subr.mxu0 %v454
  %642 = vmatpush1.msra.mxu0 %v453
  %643 = vmatprep.subr.mxu0 %v456
  %644 = vmatpush1.msra.mxu0 %v455
  %645 = vmatprep.subr.mxu0 %v458
  %646 = vmatpush1.msra.mxu0 %v457
  %647 = vmatprep.subr.mxu0 %v460
  %648 = vmatpush1.msra.mxu0 %v459
  %649 = vmatprep.subr.mxu0 %v462
  %650 = vmatpush1.msra.mxu0 %v461
  %651 = vmatprep.subr.mxu0 %v464
  %652 = vmatpush1.msra.mxu0 %v463
  %653 = vmatprep.subr.mxu0 %v466
  %654 = vmatpush1.msra.mxu0 %v465
  %655 = vmatprep.subr.mxu0 %v468
  %656 = vmatpush1.msra.mxu0 %v467
  %657 = vmatprep.subr.mxu0 %v470
  %658 = vmatpush1.msra.mxu0 %v469
  %659 = vmatprep.subr.mxu0 %v472
  %660 = vmatpush1.msra.mxu0 %v471
  %661 = vmatprep.subr.mxu0 %v474
  %662 = vmatpush1.msra.mxu0 %v473
  %663 = vmatprep.subr.mxu0 %v476
  %664 = vmatpush1.msra.mxu0 %v475
  %665 = vmatprep.subr.mxu0 %v478
  %666 = vmatpush1.msra.mxu0 %v477
  %667 = vmatprep.subr.mxu0 %v480
  %668 = vmatpush1.msra.mxu0 %v479
  %669 = vmatprep.subr.mxu0 %v482
  %670 = vmatpush1.msra.mxu0 %v481
  %671 = vmatprep.subr.mxu0 %v484
  %672 = vmatpush1.msra.mxu0 %v483
  %673 = vmatprep.subr.mxu0 %v486
  %674 = vmatpush1.msra.mxu0 %v485
  %675 = vmatprep.subr.mxu0 %v488
  %676 = vmatpush1.msra.mxu0 %v487
  %677 = vmatprep.subr.mxu0 %v490
  %678 = vmatpush1.msra.mxu0 %v489
  %679 = vmatprep.subr.mxu0 %v492
  %680 = vmatpush1.msra.mxu0 %v491
  %681 = vmatprep.subr.mxu0 %v494
  %682 = vmatpush1.msra.mxu0 %v493
  %683 = vmatprep.subr.mxu0 %v496
  %684 = vmatpush1.msra.mxu0 %v495
  %685 = vmatprep.subr.mxu0 %v498
  %686 = vmatpush1.msra.mxu0 %v497
  %687 = vmatprep.subr.mxu0 %v500
  %688 = vmatpush1.msra.mxu0 %v499
  %689 = vmatprep.subr.mxu0 %v502
  %690 = vmatpush1.msra.mxu0 %v501
  %691 = vmatprep.subr.mxu0 %v504
  %692 = vmatpush1.msra.mxu0 %v503
  %693 = vmatprep.subr.mxu0 %v506
  %694 = vmatpush1.msra.mxu0 %v505
  %695 = vmatprep.subr.mxu0 %v508
  %696 = vmatpush1.msra.mxu0 %v507
  %697 = vmatprep.subr.mxu0 %v510
  %698 = vmatpush1.msra.mxu0 %v509
  %699 = vmatprep.subr.mxu0 %v512
  %700 = vmatpush1.msra.mxu0 %v511
  %701 = vmatprep.mubr.f32.mxu0 %v426
  %702 = vmatmul.mubr.f32.gmra.mrb[0].mxu0 %v425
  %v703 = vpop.f32.mrb[0].mxu0
  %v704 = vadd.f32 0.0, %v703
  %v705 = vpop.f32.mrb[0].mxu0
  %v706 = vadd.f32 0.0, %v705
  %707 = vmatprep.mubr.f32.mxu0 %v432
  %708 = vmatmul.mubr.f32.gmra.mrb[0].mxu0 %v431
  %v709 = vpop.f32.mrb[0].mxu0
  %v710 = vadd.f32 0.0, %v709
  %v711 = vpop.f32.mrb[0].mxu0
  %v712 = vadd.f32 0.0, %v711
  %713 = vmatprep.mubr.f32.mxu0 %v438
  %714 = vmatmul.mubr.f32.gmra.mrb[0].mxu0 %v437
  %v715 = vpop.f32.mrb[0].mxu0
  %v716 = vadd.f32 0.0, %v715
  %v717 = vpop.f32.mrb[0].mxu0
  %v718 = vadd.f32 0.0, %v717
  %719 = vmatprep.mubr.f32.mxu0 %v444
  %720 = vmatmul.mubr.f32.gmra.mrb[0].mxu0 %v443
  %v721 = vpop.f32.mrb[0].mxu0
  %v722 = vadd.f32 0.0, %v721
  %v723 = vpop.f32.mrb[0].mxu0
  %v724 = vadd.f32 0.0, %v723
  %725 = vdwg.mxu0
  %726 = vmatprep.subr.mxu0 %v514
  %727 = vmatpush1.msra.mxu0 %v513
  %728 = vmatprep.subr.mxu0 %v516
  %729 = vmatpush1.msra.mxu0 %v515
  %730 = vmatprep.subr.mxu0 %v518
  %731 = vmatpush1.msra.mxu0 %v517
  %732 = vmatprep.subr.mxu0 %v520
  %733 = vmatpush1.msra.mxu0 %v519
  %734 = vmatprep.subr.mxu0 %v522
  %735 = vmatpush1.msra.mxu0 %v521
  %736 = vmatprep.subr.mxu0 %v524
  %737 = vmatpush1.msra.mxu0 %v523
  %738 = vmatprep.subr.mxu0 %v526
  %739 = vmatpush1.msra.mxu0 %v525
  %740 = vmatprep.subr.mxu0 %v528
  %741 = vmatpush1.msra.mxu0 %v527
  %742 = vmatprep.subr.mxu0 %v530
  %743 = vmatpush1.msra.mxu0 %v529
  %744 = vmatprep.subr.mxu0 %v532
  %745 = vmatpush1.msra.mxu0 %v531
  %746 = vmatprep.subr.mxu0 %v534
  %747 = vmatpush1.msra.mxu0 %v533
  %748 = vmatprep.subr.mxu0 %v536
  %749 = vmatpush1.msra.mxu0 %v535
  %750 = vmatprep.subr.mxu0 %v538
  %751 = vmatpush1.msra.mxu0 %v537
  %752 = vmatprep.subr.mxu0 %v540
  %753 = vmatpush1.msra.mxu0 %v539
  %754 = vmatprep.subr.mxu0 %v542
  %755 = vmatpush1.msra.mxu0 %v541
  %756 = vmatprep.subr.mxu0 %v544
  %757 = vmatpush1.msra.mxu0 %v543
  %758 = vmatprep.subr.mxu0 %v546
  %759 = vmatpush1.msra.mxu0 %v545
  %760 = vmatprep.subr.mxu0 %v548
  %761 = vmatpush1.msra.mxu0 %v547
  %762 = vmatprep.subr.mxu0 %v550
  %763 = vmatpush1.msra.mxu0 %v549
  %764 = vmatprep.subr.mxu0 %v552
  %765 = vmatpush1.msra.mxu0 %v551
  %766 = vmatprep.subr.mxu0 %v554
  %767 = vmatpush1.msra.mxu0 %v553
  %768 = vmatprep.subr.mxu0 %v556
  %769 = vmatpush1.msra.mxu0 %v555
  %770 = vmatprep.subr.mxu0 %v558
  %771 = vmatpush1.msra.mxu0 %v557
  %772 = vmatprep.subr.mxu0 %v560
  %773 = vmatpush1.msra.mxu0 %v559
  %774 = vmatprep.subr.mxu0 %v562
  %775 = vmatpush1.msra.mxu0 %v561
  %776 = vmatprep.subr.mxu0 %v564
  %777 = vmatpush1.msra.mxu0 %v563
  %778 = vmatprep.subr.mxu0 %v566
  %779 = vmatpush1.msra.mxu0 %v565
  %780 = vmatprep.subr.mxu0 %v568
  %781 = vmatpush1.msra.mxu0 %v567
  %782 = vmatprep.subr.mxu0 %v570
  %783 = vmatpush1.msra.mxu0 %v569
  %784 = vmatprep.subr.mxu0 %v572
  %785 = vmatpush1.msra.mxu0 %v571
  %786 = vmatprep.subr.mxu0 %v574
  %787 = vmatpush1.msra.mxu0 %v573
  %788 = vmatprep.subr.mxu0 %v576
  %789 = vmatpush1.msra.mxu0 %v575
  %790 = vmatprep.mubr.f32.mxu0 %v428
  %791 = vmatmul.mubr.f32.gmra.mrb[0].mxu0 %v427
  %v792 = vpop.f32.mrb[0].mxu0
  %v793 = vadd.f32 %v704, %v792
  %v794 = vpop.f32.mrb[0].mxu0
  %v795 = vadd.f32 %v706, %v794
  %796 = vmatprep.mubr.f32.mxu0 %v434
  %797 = vmatmul.mubr.f32.gmra.mrb[0].mxu0 %v433
  %v798 = vpop.f32.mrb[0].mxu0
  %v799 = vadd.f32 %v710, %v798
  %v800 = vpop.f32.mrb[0].mxu0
  %v801 = vadd.f32 %v712, %v800
  %802 = vmatprep.mubr.f32.mxu0 %v440
  %803 = vmatmul.mubr.f32.gmra.mrb[0].mxu0 %v439
  %v804 = vpop.f32.mrb[0].mxu0
  %v805 = vadd.f32 %v716, %v804
  %v806 = vpop.f32.mrb[0].mxu0
  %v807 = vadd.f32 %v718, %v806
  %808 = vmatprep.mubr.f32.mxu0 %v446
  %809 = vmatmul.mubr.f32.gmra.mrb[0].mxu0 %v445
  %v810 = vpop.f32.mrb[0].mxu0
  %v811 = vadd.f32 %v722, %v810
  %v812 = vpop.f32.mrb[0].mxu0
  %v813 = vadd.f32 %v724, %v812
  %814 = vdwg.mxu0
  %815 = vmatprep.subr.mxu0 %v578
  %816 = vmatpush1.msra.mxu0 %v577
  %817 = vmatprep.subr.mxu0 %v580
  %818 = vmatpush1.msra.mxu0 %v579
  %819 = vmatprep.subr.mxu0 %v582
  %820 = vmatpush1.msra.mxu0 %v581
  %821 = vmatprep.subr.mxu0 %v584
  %822 = vmatpush1.msra.mxu0 %v583
  %823 = vmatprep.subr.mxu0 %v586
  %824 = vmatpush1.msra.mxu0 %v585
  %825 = vmatprep.subr.mxu0 %v588
  %826 = vmatpush1.msra.mxu0 %v587
  %827 = vmatprep.subr.mxu0 %v590
  %828 = vmatpush1.msra.mxu0 %v589
  %829 = vmatprep.subr.mxu0 %v592
  %830 = vmatpush1.msra.mxu0 %v591
  %831 = vmatprep.subr.mxu0 %v594
  %832 = vmatpush1.msra.mxu0 %v593
  %833 = vmatprep.subr.mxu0 %v596
  %834 = vmatpush1.msra.mxu0 %v595
  %835 = vmatprep.subr.mxu0 %v598
  %836 = vmatpush1.msra.mxu0 %v597
  %837 = vmatprep.subr.mxu0 %v600
  %838 = vmatpush1.msra.mxu0 %v599
  %839 = vmatprep.subr.mxu0 %v602
  %840 = vmatpush1.msra.mxu0 %v601
  %841 = vmatprep.subr.mxu0 %v604
  %842 = vmatpush1.msra.mxu0 %v603
  %843 = vmatprep.subr.mxu0 %v606
  %844 = vmatpush1.msra.mxu0 %v605
  %845 = vmatprep.subr.mxu0 %v608
  %846 = vmatpush1.msra.mxu0 %v607
  %847 = vmatprep.subr.mxu0 %v610
  %848 = vmatpush1.msra.mxu0 %v609
  %849 = vmatprep.subr.mxu0 %v612
  %850 = vmatpush1.msra.mxu0 %v611
  %851 = vmatprep.subr.mxu0 %v614
  %852 = vmatpush1.msra.mxu0 %v613
  %853 = vmatprep.subr.mxu0 %v635
  %854 = vmatpush1.msra.mxu0 %v632
  %855 = vmatprep.subr.mxu0 0.0
  %856 = vmatpush1.msra.mxu0 0.0
  %857 = vmatprep.subr.mxu0 0.0
  %858 = vmatpush1.msra.mxu0 0.0
  %859 = vmatprep.subr.mxu0 0.0
  %860 = vmatpush1.msra.mxu0 0.0
  %861 = vmatprep.subr.mxu0 0.0
  %862 = vmatpush1.msra.mxu0 0.0
  %863 = vmatprep.subr.mxu0 0.0
  %864 = vmatpush1.msra.mxu0 0.0
  %865 = vmatprep.subr.mxu0 0.0
  %866 = vmatpush1.msra.mxu0 0.0
  %867 = vmatprep.subr.mxu0 0.0
  %868 = vmatpush1.msra.mxu0 0.0
  %869 = vmatprep.subr.mxu0 0.0
  %870 = vmatpush1.msra.mxu0 0.0
  %871 = vmatprep.subr.mxu0 0.0
  %872 = vmatpush1.msra.mxu0 0.0
  %873 = vmatprep.subr.mxu0 0.0
  %874 = vmatpush1.msra.mxu0 0.0
  %875 = vmatprep.subr.mxu0 0.0
  %876 = vmatpush1.msra.mxu0 0.0
  %877 = vmatprep.subr.mxu0 0.0
  %878 = vmatpush1.msra.mxu0 0.0
  %879 = vmatprep.mubr.f32.mxu0 %v619
  %880 = vmatmul.mubr.f32.gmra.mrb[0].mxu0 %v429
  %v881 = vpop.f32.mrb[0].mxu0
  %v882 = vadd.f32 %v793, %v881
  %v883 = vpop.f32.mrb[0].mxu0
  %v884 = vadd.f32 %v795, %v883
  %885 = vmatprep.mubr.f32.mxu0 %v622
  %886 = vmatmul.mubr.f32.gmra.mrb[0].mxu0 %v435
  %v887 = vpop.f32.mrb[0].mxu0
  %v888 = vadd.f32 %v799, %v887
  %v889 = vpop.f32.mrb[0].mxu0
  %v890 = vadd.f32 %v801, %v889
  %891 = vmatprep.mubr.f32.mxu0 %v625
  %892 = vmatmul.mubr.f32.gmra.mrb[0].mxu0 %v441
  %v893 = vpop.f32.mrb[0].mxu0
  %v894 = vadd.f32 %v805, %v893
  %v895 = vpop.f32.mrb[0].mxu0
  %v896 = vadd.f32 %v807, %v895
  %897 = vmatprep.mubr.f32.mxu0 %v628
  %898 = vmatmul.mubr.f32.gmra.mrb[0].mxu0 %v447
  %v899 = vpop.f32.mrb[0].mxu0
  %v900 = vadd.f32 %v811, %v899
  %v901 = vpop.f32.mrb[0].mxu0
  %v902 = vadd.f32 %v813, %v901
  %903 = vdwg.mxu0
  %v904 = vlog2.pop %v882
  %v905 = vmul.f32 %v904, 0.6931472
  %v906 = vlog2.pop %v884
  %v907 = vmul.f32 %v906, 0.6931472
  %v908 = vlog2.pop %v888
  %v909 = vmul.f32 %v908, 0.6931472
  %v910 = vlog2.pop %v890
  %v911 = vmul.f32 %v910, 0.6931472
  %v912 = vlog2.pop %v894
  %v913 = vmul.f32 %v912, 0.6931472
  %v914 = vlog2.pop %v896
  %v915 = vmul.f32 %v914, 0.6931472
  %v916 = vlog2.pop %v900
  %v917 = vmul.f32 %v916, 0.6931472
  %v918 = vlog2.pop %v902
  %v919 = vmul.f32 %v918, 0.6931472
  %v920 = vld [vmem:[%s4] sm:$0xff]
  %v921 = vld [vmem:[%s4 + $0x8] sm:$0xff]
  %v922 = vld [vmem:[%s4 + $0x10] sm:$0xff]
  %v923 = vld [vmem:[%s4 + $0x18] sm:$0xff]
  %v924 = vld [vmem:[%s4 + $0x20] sm:$0xff]
  %v925 = vld [vmem:[%s4 + $0x28] sm:$0xff]
  %v926 = vld [vmem:[%s4 + $0x30] sm:$0xff]
  %v927 = vld [vmem:[%s4 + $0x38] sm:$0xff]
  %v928 = vld [vmem:[%s4 + $0x40] sm:$0xff]
  %v929 = vld [vmem:[%s4 + $0x48] sm:$0xff]
  %v930 = vld [vmem:[%s4 + $0x50] sm:$0xff]
  %v931 = vld [vmem:[%s4 + $0x58] sm:$0xff]
  %v932 = vld [vmem:[%s4 + $0x60] sm:$0xff]
  %v933 = vld [vmem:[%s4 + $0x68] sm:$0xff]
  %v934 = vld [vmem:[%s4 + $0x70] sm:$0xff]
  %v935 = vld [vmem:[%s4 + $0x78] sm:$0xff]
  %v936 = vld [vmem:[%s4 + $0x80] sm:$0xff]
  %v937 = vld [vmem:[%s4 + $0x88] sm:$0xff]
  %v938 = vld [vmem:[%s4 + $0x90] sm:$0xff]
  %v939 = vld [vmem:[%s4 + $0x98] sm:$0xff]
  %v940 = vld [vmem:[%s4 + $0xa0] sm:$0xff]
  %v941 = vld [vmem:[%s4 + $0xa8] sm:$0xff]
  %v942 = vld [vmem:[%s4 + $0xb0] sm:$0xff]
  %v943 = vld [vmem:[%s4 + $0xb8] sm:$0xff]
  %v944 = vld [vmem:[%s4 + $0xc0] sm:$0xff]
  %v945 = vld [vmem:[%s4 + $0xc8] sm:$0xff]
  %v946 = vld [vmem:[%s4 + $0xd0] sm:$0xff]
  %v947 = vld [vmem:[%s4 + $0xd8] sm:$0xff]
  %v948 = vld [vmem:[%s4 + $0xe0] sm:$0xff]
  %v949 = vld [vmem:[%s4 + $0xe8] sm:$0xff]
  %v950 = vld [vmem:[%s4 + $0xf0] sm:$0xff]
  %v951 = vld [vmem:[%s4 + $0xf8] sm:$0xff]
  %v952 = vld [vmem:[%s4 + $0x100] sm:$0xff]
  %v953 = vld [vmem:[%s4 + $0x108] sm:$0xff]
  %v954 = vld [vmem:[%s4 + $0x110] sm:$0xff]
  %v955 = vld [vmem:[%s4 + $0x118] sm:$0xff]
  %v956 = vld [vmem:[%s4 + $0x120] sm:$0xff]
  %v957 = vld [vmem:[%s4 + $0x128] sm:$0xff]
  %v958 = vld [vmem:[%s5] sm:$0x3]
  %v960 = vlaneseq
  %v961 = vshrl.u32 %v960, 7
  %v962 = vsub.s32 0, %v961
  %v963 = vrot.slane %v958, %v962
  %v964 = vlaneseq
  %v965 = vshrl.u32 %v964, 7
  %v966 = vsub.s32 1, %v965
  %v967 = vrot.slane %v958, %v966
  %vm970 = vcmask 195584
  %v972 = vsel %vm970, %v907, 0
  %v975 = vsel %vm970, %v911, 0
  %v978 = vsel %vm970, %v915, 0
  %v981 = vsel %vm970, %v919, 0
  %983 = vmatprep.subr.mxu0 %v921
  %984 = vmatpush1.msra.mxu0 %v920
  %985 = vmatprep.subr.mxu0 %v923
  %986 = vmatpush1.msra.mxu0 %v922
  %987 = vmatprep.subr.mxu0 %v925
  %988 = vmatpush1.msra.mxu0 %v924
  %989 = vmatprep.subr.mxu0 %v927
  %990 = vmatpush1.msra.mxu0 %v926
  %991 = vmatprep.subr.mxu0 %v929
  %992 = vmatpush1.msra.mxu0 %v928
  %993 = vmatprep.subr.mxu0 %v931
  %994 = vmatpush1.msra.mxu0 %v930
  %995 = vmatprep.subr.mxu0 %v933
  %996 = vmatpush1.msra.mxu0 %v932
  %997 = vmatprep.subr.mxu0 %v935
  %998 = vmatpush1.msra.mxu0 %v934
  %999 = vmatprep.subr.mxu0 %v937
  %1000 = vmatpush1.msra.mxu0 %v936
  %1001 = vmatprep.subr.mxu0 %v939
  %1002 = vmatpush1.msra.mxu0 %v938
  %1003 = vmatprep.subr.mxu0 %v941
  %1004 = vmatpush1.msra.mxu0 %v940
  %1005 = vmatprep.subr.mxu0 %v943
  %1006 = vmatpush1.msra.mxu0 %v942
  %1007 = vmatprep.subr.mxu0 %v945
  %1008 = vmatpush1.msra.mxu0 %v944
  %1009 = vmatprep.subr.mxu0 %v947
  %1010 = vmatpush1.msra.mxu0 %v946
  %1011 = vmatprep.subr.mxu0 %v949
  %1012 = vmatpush1.msra.mxu0 %v948
  %1013 = vmatprep.subr.mxu0 %v951
  %1014 = vmatpush1.msra.mxu0 %v950
  %1015 = vmatprep.subr.mxu0 %v953
  %1016 = vmatpush1.msra.mxu0 %v952
  %1017 = vmatprep.subr.mxu0 %v955
  %1018 = vmatpush1.msra.mxu0 %v954
  %1019 = vmatprep.subr.mxu0 %v957
  %1020 = vmatpush1.msra.mxu0 %v956
  %1021 = vmatprep.subr.mxu0 0.0
  %1022 = vmatpush1.msra.mxu0 0.0
  %1023 = vmatprep.subr.mxu0 0.0
  %1024 = vmatpush1.msra.mxu0 0.0
  %1025 = vmatprep.subr.mxu0 0.0
  %1026 = vmatpush1.msra.mxu0 0.0
  %1027 = vmatprep.subr.mxu0 0.0
  %1028 = vmatpush1.msra.mxu0 0.0
  %1029 = vmatprep.subr.mxu0 0.0
  %1030 = vmatpush1.msra.mxu0 0.0
  %1031 = vmatprep.subr.mxu0 0.0
  %1032 = vmatpush1.msra.mxu0 0.0
  %1033 = vmatprep.subr.mxu0 0.0
  %1034 = vmatpush1.msra.mxu0 0.0
  %1035 = vmatprep.subr.mxu0 0.0
  %1036 = vmatpush1.msra.mxu0 0.0
  %1037 = vmatprep.subr.mxu0 0.0
  %1038 = vmatpush1.msra.mxu0 0.0
  %1039 = vmatprep.subr.mxu0 0.0
  %1040 = vmatpush1.msra.mxu0 0.0
  %1041 = vmatprep.subr.mxu0 0.0
  %1042 = vmatpush1.msra.mxu0 0.0
  %1043 = vmatprep.subr.mxu0 0.0
  %1044 = vmatpush1.msra.mxu0 0.0
  %1045 = vmatprep.subr.mxu0 0.0
  %1046 = vmatpush1.msra.mxu0 0.0
  %1047 = vmatprep.mubr.f32.mxu0 %v972
  %1048 = vmatmul.mubr.f32.gmra.mrb[0].mxu0 %v905
  %v1049 = vpop.f32.mrb[0].mxu0
  %v1050 = vadd.f32 %v963, %v1049
  %v1051 = vpop.f32.mrb[0].mxu0
  %v1052 = vadd.f32 %v967, %v1051
  %1053 = vmatprep.mubr.f32.mxu0 %v975
  %1054 = vmatmul.mubr.f32.gmra.mrb[0].mxu0 %v909
  %v1055 = vpop.f32.mrb[0].mxu0
  %v1056 = vadd.f32 %v963, %v1055
  %v1057 = vpop.f32.mrb[0].mxu0
  %v1058 = vadd.f32 %v967, %v1057
  %1059 = vmatprep.mubr.f32.mxu0 %v978
  %1060 = vmatmul.mubr.f32.gmra.mrb[0].mxu0 %v913
  %v1061 = vpop.f32.mrb[0].mxu0
  %v1062 = vadd.f32 %v963, %v1061
  %v1063 = vpop.f32.mrb[0].mxu0
  %v1064 = vadd.f32 %v967, %v1063
  %1065 = vmatprep.mubr.f32.mxu0 %v981
  %1066 = vmatmul.mubr.f32.gmra.mrb[0].mxu0 %v917
  %v1067 = vpop.f32.mrb[0].mxu0
  %v1068 = vadd.f32 %v963, %v1067
  %v1069 = vpop.f32.mrb[0].mxu0
  %v1070 = vadd.f32 %v967, %v1069
  %1071 = vdwg.mxu0
  %vm1072 = vcmp.gt.f32.partialorder %v1050, 0.0
  %vm1073 = vcmp.gt.f32.partialorder %v1052, 0.0
  %vm1074 = vcmp.gt.f32.partialorder %v1056, 0.0
  %vm1075 = vcmp.gt.f32.partialorder %v1058, 0.0
  %vm1076 = vcmp.gt.f32.partialorder %v1062, 0.0
  %vm1077 = vcmp.gt.f32.partialorder %v1064, 0.0
  %vm1078 = vcmp.gt.f32.partialorder %v1068, 0.0
  %vm1079 = vcmp.gt.f32.partialorder %v1070, 0.0
  %v1080 = vmul.f32 %v1050, 0.01
  %v1081 = vmul.f32 %v1052, 0.01
  %v1082 = vmul.f32 %v1056, 0.01
  %v1083 = vmul.f32 %v1058, 0.01
  %v1084 = vmul.f32 %v1062, 0.01
  %v1085 = vmul.f32 %v1064, 0.01
  %v1086 = vmul.f32 %v1068, 0.01
  %v1087 = vmul.f32 %v1070, 0.01
  %v1088 = vsel %vm1072, %v1050, %v1080
  %v1089 = vsel %vm1073, %v1052, %v1081
  %v1090 = vsel %vm1074, %v1056, %v1082
  %v1091 = vsel %vm1075, %v1058, %v1083
  %v1092 = vsel %vm1076, %v1062, %v1084
  %v1093 = vsel %vm1077, %v1064, %v1085
  %v1094 = vsel %vm1078, %v1068, %v1086
  %v1095 = vsel %vm1079, %v1070, %v1087
  %v1096 = vld [vmem:[%s6] sm:$0xff]
  %v1097 = vld [vmem:[%s6 + $0x8] sm:$0xff]
  %v1098 = vld [vmem:[%s6 + $0x10] sm:$0xff]
  %v1099 = vld [vmem:[%s6 + $0x18] sm:$0xff]
  %v1100 = vld [vmem:[%s6 + $0x20] sm:$0xff]
  %v1101 = vld [vmem:[%s6 + $0x28] sm:$0xff]
  %v1102 = vld [vmem:[%s6 + $0x30] sm:$0xff]
  %v1103 = vld [vmem:[%s6 + $0x38] sm:$0xff]
  %v1104 = vld [vmem:[%s6 + $0x40] sm:$0xff]
  %v1105 = vld [vmem:[%s6 + $0x48] sm:$0xff]
  %v1106 = vld [vmem:[%s6 + $0x50] sm:$0xff]
  %v1107 = vld [vmem:[%s6 + $0x58] sm:$0xff]
  %v1108 = vld [vmem:[%s6 + $0x60] sm:$0xff]
  %v1109 = vld [vmem:[%s6 + $0x68] sm:$0xff]
  %v1110 = vld [vmem:[%s6 + $0x70] sm:$0xff]
  %v1111 = vld [vmem:[%s6 + $0x78] sm:$0xff]
  %v1112 = vld [vmem:[%s6 + $0x80] sm:$0xff]
  %v1113 = vld [vmem:[%s6 + $0x88] sm:$0xff]
  %v1114 = vld [vmem:[%s6 + $0x90] sm:$0xff]
  %v1115 = vld [vmem:[%s7] sm:$0x1]
  %v1117 = vlaneseq
  %v1118 = vshrl.u32 %v1117, 7
  %v1119 = vsub.s32 0, %v1118
  %v1120 = vrot.slane %v1115, %v1119
  %v1123 = vsel %vm970, %v1089, 0
  %v1126 = vsel %vm970, %v1091, 0
  %v1129 = vsel %vm970, %v1093, 0
  %v1132 = vsel %vm970, %v1095, 0
  %1134 = vmatprep.subr.mxu0 0.0
  %1135 = vmatpush1.msra.mxu0 %v1096
  %1136 = vmatprep.subr.mxu0 0.0
  %1137 = vmatpush1.msra.mxu0 %v1097
  %1138 = vmatprep.subr.mxu0 0.0
  %1139 = vmatpush1.msra.mxu0 %v1098
  %1140 = vmatprep.subr.mxu0 0.0
  %1141 = vmatpush1.msra.mxu0 %v1099
  %1142 = vmatprep.subr.mxu0 0.0
  %1143 = vmatpush1.msra.mxu0 %v1100
  %1144 = vmatprep.subr.mxu0 0.0
  %1145 = vmatpush1.msra.mxu0 %v1101
  %1146 = vmatprep.subr.mxu0 0.0
  %1147 = vmatpush1.msra.mxu0 %v1102
  %1148 = vmatprep.subr.mxu0 0.0
  %1149 = vmatpush1.msra.mxu0 %v1103
  %1150 = vmatprep.subr.mxu0 0.0
  %1151 = vmatpush1.msra.mxu0 %v1104
  %1152 = vmatprep.subr.mxu0 0.0
  %1153 = vmatpush1.msra.mxu0 %v1105
  %1154 = vmatprep.subr.mxu0 0.0
  %1155 = vmatpush1.msra.mxu0 %v1106
  %1156 = vmatprep.subr.mxu0 0.0
  %1157 = vmatpush1.msra.mxu0 %v1107
  %1158 = vmatprep.subr.mxu0 0.0
  %1159 = vmatpush1.msra.mxu0 %v1108
  %1160 = vmatprep.subr.mxu0 0.0
  %1161 = vmatpush1.msra.mxu0 %v1109
  %1162 = vmatprep.subr.mxu0 0.0
  %1163 = vmatpush1.msra.mxu0 %v1110
  %1164 = vmatprep.subr.mxu0 0.0
  %1165 = vmatpush1.msra.mxu0 %v1111
  %1166 = vmatprep.subr.mxu0 0.0
  %1167 = vmatpush1.msra.mxu0 %v1112
  %1168 = vmatprep.subr.mxu0 0.0
  %1169 = vmatpush1.msra.mxu0 %v1113
  %1170 = vmatprep.subr.mxu0 0.0
  %1171 = vmatpush1.msra.mxu0 %v1114
  %1172 = vmatprep.subr.mxu0 0.0
  %1173 = vmatpush1.msra.mxu0 0.0
  %1174 = vmatprep.subr.mxu0 0.0
  %1175 = vmatpush1.msra.mxu0 0.0
  %1176 = vmatprep.subr.mxu0 0.0
  %1177 = vmatpush1.msra.mxu0 0.0
  %1178 = vmatprep.subr.mxu0 0.0
  %1179 = vmatpush1.msra.mxu0 0.0
  %1180 = vmatprep.subr.mxu0 0.0
  %1181 = vmatpush1.msra.mxu0 0.0
  %1182 = vmatprep.subr.mxu0 0.0
  %1183 = vmatpush1.msra.mxu0 0.0
  %1184 = vmatprep.subr.mxu0 0.0
  %1185 = vmatpush1.msra.mxu0 0.0
  %1186 = vmatprep.subr.mxu0 0.0
  %1187 = vmatpush1.msra.mxu0 0.0
  %1188 = vmatprep.subr.mxu0 0.0
  %1189 = vmatpush1.msra.mxu0 0.0
  %1190 = vmatprep.subr.mxu0 0.0
  %1191 = vmatpush1.msra.mxu0 0.0
  %1192 = vmatprep.subr.mxu0 0.0
  %1193 = vmatpush1.msra.mxu0 0.0
  %1194 = vmatprep.subr.mxu0 0.0
  %1195 = vmatpush1.msra.mxu0 0.0
  %1196 = vmatprep.subr.mxu0 0.0
  %1197 = vmatpush1.msra.mxu0 0.0
  %1198 = vmatprep.mubr.f32.mxu0 %v1123
  %1199 = vmatmul.mubr.f32.gmra.mrb[0].mxu0 %v1088
  %v1200 = vpop.f32.mrb[0].mxu0
  %v1201 = vadd.f32 %v1120, %v1200
  %v1202 = vpop.f32.mrb[0].mxu0
  %1203 = vmatprep.mubr.f32.mxu0 %v1126
  %1204 = vmatmul.mubr.f32.gmra.mrb[0].mxu0 %v1090
  %v1205 = vpop.f32.mrb[0].mxu0
  %v1206 = vadd.f32 %v1120, %v1205
  %v1207 = vpop.f32.mrb[0].mxu0
  %1208 = vmatprep.mubr.f32.mxu0 %v1129
  %1209 = vmatmul.mubr.f32.gmra.mrb[0].mxu0 %v1092
  %v1210 = vpop.f32.mrb[0].mxu0
  %v1211 = vadd.f32 %v1120, %v1210
  %v1212 = vpop.f32.mrb[0].mxu0
  %1213 = vmatprep.mubr.f32.mxu0 %v1132
  %1214 = vmatmul.mubr.f32.gmra.mrb[0].mxu0 %v1094
  %v1215 = vpop.f32.mrb[0].mxu0
  %v1216 = vadd.f32 %v1120, %v1215
  %v1217 = vpop.f32.mrb[0].mxu0
  %1218 = vdwg.mxu0
  %v1219 = vld [vmem:[%s8] sm:$0xff]
  %v1220 = vld [vmem:[%s8 + $0x8] sm:$0xff]
  %v1221 = vld [vmem:[%s8 + $0x10] sm:$0xff]
  %v1222 = vld [vmem:[%s8 + $0x18] sm:$0xff]
  %v1223 = vmul.f32 %v1201, %v1219
  %v1224 = vmul.f32 %v1206, %v1220
  %v1225 = vmul.f32 %v1211, %v1221
  %v1226 = vmul.f32 %v1216, %v1222
  %v1227 = vld [vmem:[%s9] sm:$0xff]
  %v1228 = vld [vmem:[%s9 + $0x8] sm:$0xff]
  %v1229 = vld [vmem:[%s9 + $0x10] sm:$0xff]
  %v1230 = vld [vmem:[%s9 + $0x18] sm:$0xff]
  %1232 = vset.pattern.permute.xlu0 0
  %1233 = vperm.xlu0 %1232, %v1227
  %v1234 = vpop.permute.xlu0 %1233
  %1237 = vset.pattern.permute.xlu0 0
  %1238 = vperm.xlu0 %1237, %v1228
  %v1239 = vpop.permute.xlu0 %1238
  %1242 = vset.pattern.permute.xlu0 0
  %1243 = vperm.xlu0 %1242, %v1229
  %v1244 = vpop.permute.xlu0 %1243
  %1247 = vset.pattern.permute.xlu0 0
  %1248 = vperm.xlu0 %1247, %v1230
  %v1249 = vpop.permute.xlu0 %1248
  %v1251 = vsub.f32 %v1223, %v1234
  %v1252 = vsub.f32 %v1224, %v1239
  %v1253 = vsub.f32 %v1225, %v1244
  %v1254 = vsub.f32 %v1226, %v1249
  %v1255 = vmax.f32 %v1251, 0.0
  %v1256 = vmax.f32 %v1252, 0.0
  %v1257 = vmax.f32 %v1253, 0.0
  %v1258 = vmax.f32 %v1254, 0.0
  %v1259 = vld [vmem:[%s10] sm:$0xff]
  %vm1260 = vcmask 261120
  %v1262 = vsel %vm1260, %v1259, 0
  %1264 = vmatprep.subr.mxu0 0.0
  %1265 = vmatpush1.msra.mxu0 %v1255
  %1266 = vmatprep.subr.mxu0 0.0
  %1267 = vmatpush1.msra.mxu0 %v1256
  %1268 = vmatprep.subr.mxu0 0.0
  %1269 = vmatpush1.msra.mxu0 %v1257
  %1270 = vmatprep.subr.mxu0 0.0
  %1271 = vmatpush1.msra.mxu0 %v1258
  %1272 = vmatprep.subr.mxu0 0.0
  %1273 = vmatpush1.msra.mxu0 0.0
  %1274 = vmatprep.subr.mxu0 0.0
  %1275 = vmatpush1.msra.mxu0 0.0
  %1276 = vmatprep.subr.mxu0 0.0
  %1277 = vmatpush1.msra.mxu0 0.0
  %1278 = vmatprep.subr.mxu0 0.0
  %1279 = vmatpush1.msra.mxu0 0.0
  %1280 = vmatprep.subr.mxu0 0.0
  %1281 = vmatpush1.msra.mxu0 0.0
  %1282 = vmatprep.subr.mxu0 0.0
  %1283 = vmatpush1.msra.mxu0 0.0
  %1284 = vmatprep.subr.mxu0 0.0
  %1285 = vmatpush1.msra.mxu0 0.0
  %1286 = vmatprep.subr.mxu0 0.0
  %1287 = vmatpush1.msra.mxu0 0.0
  %1288 = vmatprep.subr.mxu0 0.0
  %1289 = vmatpush1.msra.mxu0 0.0
  %1290 = vmatprep.subr.mxu0 0.0
  %1291 = vmatpush1.msra.mxu0 0.0
  %1292 = vmatprep.subr.mxu0 0.0
  %1293 = vmatpush1.msra.mxu0 0.0
  %1294 = vmatprep.subr.mxu0 0.0
  %1295 = vmatpush1.msra.mxu0 0.0
  %1296 = vmatprep.subr.mxu0 0.0
  %1297 = vmatpush1.msra.mxu0 0.0
  %1298 = vmatprep.subr.mxu0 0.0
  %1299 = vmatpush1.msra.mxu0 0.0
  %1300 = vmatprep.subr.mxu0 0.0
  %1301 = vmatpush1.msra.mxu0 0.0
  %1302 = vmatprep.subr.mxu0 0.0
  %1303 = vmatpush1.msra.mxu0 0.0
  %1304 = vmatprep.subr.mxu0 0.0
  %1305 = vmatpush1.msra.mxu0 0.0
  %1306 = vmatprep.subr.mxu0 0.0
  %1307 = vmatpush1.msra.mxu0 0.0
  %1308 = vmatprep.subr.mxu0 0.0
  %1309 = vmatpush1.msra.mxu0 0.0
  %1310 = vmatprep.subr.mxu0 0.0
  %1311 = vmatpush1.msra.mxu0 0.0
  %1312 = vmatprep.subr.mxu0 0.0
  %1313 = vmatpush1.msra.mxu0 0.0
  %1314 = vmatprep.subr.mxu0 0.0
  %1315 = vmatpush1.msra.mxu0 0.0
  %1316 = vmatprep.subr.mxu0 0.0
  %1317 = vmatpush1.msra.mxu0 0.0
  %1318 = vmatprep.subr.mxu0 0.0
  %1319 = vmatpush1.msra.mxu0 0.0
  %1320 = vmatprep.subr.mxu0 0.0
  %1321 = vmatpush1.msra.mxu0 0.0
  %1322 = vmatprep.subr.mxu0 0.0
  %1323 = vmatpush1.msra.mxu0 0.0
  %1324 = vmatprep.subr.mxu0 0.0
  %1325 = vmatpush1.msra.mxu0 0.0
  %1326 = vmatprep.subr.mxu0 0.0
  %1327 = vmatpush1.msra.mxu0 0.0
  %1328 = vmatprep.mubr.f32.mxu0 0.0
  %1329 = vmatmul.mubr.f32.gmra.mrb[0].mxu0 %v1262
  %v1330 = vpop.f32.mrb[0].mxu0
  %v1331 = vadd.f32 0.0, %v1330
  %v1332 = vpop.f32.mrb[0].mxu0
  %1333 = vdwg.mxu0
  %vm1334 = vcmask 621568
  %v1336 = vsel %vm1334, %v1331, 0
  %1338 = vmatprep.subr.mxu0 0.0
  %1339 = vmatpush1.xpose.msra.mxu0 %v1336
  %1340 = vmatprep.subr.mxu0 0.0
  %1341 = vmatpush1.xpose.msra.mxu0 0.0
  %1342 = vmatprep.subr.mxu0 0.0
  %1343 = vmatpush1.xpose.msra.mxu0 0.0
  %1344 = vmatprep.subr.mxu0 0.0
  %1345 = vmatpush1.xpose.msra.mxu0 0.0
  %1346 = vmatprep.subr.mxu0 0.0
  %1347 = vmatpush1.xpose.msra.mxu0 0.0
  %1348 = vmatprep.subr.mxu0 0.0
  %1349 = vmatpush1.xpose.msra.mxu0 0.0
  %1350 = vmatprep.subr.mxu0 0.0
  %1351 = vmatpush1.xpose.msra.mxu0 0.0
  %1352 = vmatprep.subr.mxu0 0.0
  %1353 = vmatpush1.xpose.msra.mxu0 0.0
  %1354 = vmatprep.subr.mxu0 0.0
  %1355 = vmatpush1.xpose.msra.mxu0 0.0
  %1356 = vmatprep.subr.mxu0 0.0
  %1357 = vmatpush1.xpose.msra.mxu0 0.0
  %1358 = vmatprep.subr.mxu0 0.0
  %1359 = vmatpush1.xpose.msra.mxu0 0.0
  %1360 = vmatprep.subr.mxu0 0.0
  %1361 = vmatpush1.xpose.msra.mxu0 0.0
  %1362 = vmatprep.subr.mxu0 0.0
  %1363 = vmatpush1.xpose.msra.mxu0 0.0
  %1364 = vmatprep.subr.mxu0 0.0
  %1365 = vmatpush1.xpose.msra.mxu0 0.0
  %1366 = vmatprep.subr.mxu0 0.0
  %1367 = vmatpush1.xpose.msra.mxu0 0.0
  %1368 = vmatprep.subr.mxu0 0.0
  %1369 = vmatpush1.xpose.msra.mxu0 0.0
  %1370 = vmatprep.subr.mxu0 0.0
  %1371 = vmatpush1.xpose.msra.mxu0 0.0
  %1372 = vmatprep.subr.mxu0 0.0
  %1373 = vmatpush1.xpose.msra.mxu0 0.0
  %1374 = vmatprep.subr.mxu0 0.0
  %1375 = vmatpush1.xpose.msra.mxu0 0.0
  %1376 = vmatprep.subr.mxu0 0.0
  %1377 = vmatpush1.xpose.msra.mxu0 0.0
  %1378 = vmatprep.subr.mxu0 0.0
  %1379 = vmatpush1.xpose.msra.mxu0 0.0
  %1380 = vmatprep.subr.mxu0 0.0
  %1381 = vmatpush1.xpose.msra.mxu0 0.0
  %1382 = vmatprep.subr.mxu0 0.0
  %1383 = vmatpush1.xpose.msra.mxu0 0.0
  %1384 = vmatprep.subr.mxu0 0.0
  %1385 = vmatpush1.xpose.msra.mxu0 0.0
  %1386 = vmatprep.subr.mxu0 0.0
  %1387 = vmatpush1.xpose.msra.mxu0 0.0
  %1388 = vmatprep.subr.mxu0 0.0
  %1389 = vmatpush1.xpose.msra.mxu0 0.0
  %1390 = vmatprep.subr.mxu0 0.0
  %1391 = vmatpush1.xpose.msra.mxu0 0.0
  %1392 = vmatprep.subr.mxu0 0.0
  %1393 = vmatpush1.xpose.msra.mxu0 0.0
  %1394 = vmatprep.subr.mxu0 0.0
  %1395 = vmatpush1.xpose.msra.mxu0 0.0
  %1396 = vmatprep.subr.mxu0 0.0
  %1397 = vmatpush1.xpose.msra.mxu0 0.0
  %1398 = vmatprep.subr.mxu0 0.0
  %1399 = vmatpush1.xpose.msra.mxu0 0.0
  %1400 = vmatprep.subr.mxu0 0.0
  %1401 = vmatpush1.xpose.msra.mxu0 0.0
  %1402 = vmatprep.mubr.f32.mxu0 0.0
  %1403 = vmatmul.mubr.f32.gmra.mrb[0].mxu0 %v1336
  %v1404 = vpop.f32.mrb[0].mxu0
  %v1405 = vadd.f32 0.0, %v1404
  %v1406 = vpop.f32.mrb[0].mxu0
  %1407 = vdwg.mxu0
  %v1408 = vlaneseq
  %v1409 = vshrl.u32 %v1408, 7
  %v1410 = vlaneseq
  %v1411 = vand.u32 %v1410, 127
  %vm1412 = vcmp.eq.s32.totalorder %v1409, %v1411
  %v1413 = vsel %vm1412, 1, 0
  %v1414 = vcvt.s32.f32 %v1413
  %v1415 = vld [vmem:[%s11] sm:$0xff]
  %v1416 = vmul.f32 %v1405, %v1415
  %v1417 = vmax.f32 %v1416, 0.0
  %v1418 = vadd.f32 %v1417, %v1414
  %vm1419 = vcmask 64512
  %v1420 = vsel %vm1419, %v1418, 0.0
  %1421 = vadd.xlane.f32.xlu0 %v1420
  %v1422 = vpop.xlane.xlu0 %1421
  %vm1423 = vcmp.eq.f32.partialorder %v1422, 0.0
  %v1424 = vsel %vm1423, 1.0, 0.0
  %v1425 = vadd.f32 %v1422, %v1424
  %v1426 = vrot.slane %v1420, 4
  %v1427 = vadd.f32 %v1420, %v1426
  %v1428 = vrot.slane %v1427, 2
  %v1429 = vadd.f32 %v1427, %v1428
  %v1430 = vrot.slane %v1429, 1
  %v1431 = vadd.f32 %v1429, %v1430
  %vm1432 = vcmp.eq.f32.partialorder %v1431, 0.0
  %v1433 = vsel %vm1432, 1.0, 0.0
  %v1434 = vadd.f32 %v1431, %v1433
  %v1435 = vrsqrt.pop %v1425
  %v1436 = vmul.f32 %v1435, %v1418
  %v1437 = vrsqrt.pop %v1434
  %v1438 = vmul.f32 %v1436, %v1437
  %v1439 = vld [vmem:[%s12] sm:$0xff]
  %v1440 = vld [vmem:[%s13] sm:$0xff]
  %v1441 = vld [vmem:[%s13 + $0x8] sm:$0xff]
  %v1442 = vld [vmem:[%s13 + $0x10] sm:$0xff]
  %v1443 = vld [vmem:[%s13 + $0x18] sm:$0xff]
  %v1444 = vld [vmem:[%s13 + $0x20] sm:$0xff]
  %v1445 = vld [vmem:[%s13 + $0x28] sm:$0xff]
  %v1446 = vld [vmem:[%s13 + $0x30] sm:$0xff]
  %v1447 = vld [vmem:[%s13 + $0x38] sm:$0xff]
  %v1448 = vld [vmem:[%s13 + $0x40] sm:$0xff]
  %v1449 = vld [vmem:[%s13 + $0x48] sm:$0xf]
  %v1451 = vsel %vm630, %v1449, 0
  %1453 = vmatprep.subr.mxu0 0.0
  %1454 = vmatpush1.msra.mxu0 %v1440
  %1455 = vmatprep.subr.mxu0 0.0
  %1456 = vmatpush1.msra.mxu0 %v1441
  %1457 = vmatprep.subr.mxu0 0.0
  %1458 = vmatpush1.msra.mxu0 %v1442
  %1459 = vmatprep.subr.mxu0 0.0
  %1460 = vmatpush1.msra.mxu0 %v1443
  %1461 = vmatprep.subr.mxu0 0.0
  %1462 = vmatpush1.msra.mxu0 %v1444
  %1463 = vmatprep.subr.mxu0 0.0
  %1464 = vmatpush1.msra.mxu0 %v1445
  %1465 = vmatprep.subr.mxu0 0.0
  %1466 = vmatpush1.msra.mxu0 %v1446
  %1467 = vmatprep.subr.mxu0 0.0
  %1468 = vmatpush1.msra.mxu0 %v1447
  %1469 = vmatprep.subr.mxu0 0.0
  %1470 = vmatpush1.msra.mxu0 %v1448
  %1471 = vmatprep.subr.mxu0 0.0
  %1472 = vmatpush1.msra.mxu0 %v1451
  %1473 = vmatprep.subr.mxu0 0.0
  %1474 = vmatpush1.msra.mxu0 0.0
  %1475 = vmatprep.subr.mxu0 0.0
  %1476 = vmatpush1.msra.mxu0 0.0
  %1477 = vmatprep.subr.mxu0 0.0
  %1478 = vmatpush1.msra.mxu0 0.0
  %1479 = vmatprep.subr.mxu0 0.0
  %1480 = vmatpush1.msra.mxu0 0.0
  %1481 = vmatprep.subr.mxu0 0.0
  %1482 = vmatpush1.msra.mxu0 0.0
  %1483 = vmatprep.subr.mxu0 0.0
  %1484 = vmatpush1.msra.mxu0 0.0
  %1485 = vmatprep.subr.mxu0 0.0
  %1486 = vmatpush1.msra.mxu0 0.0
  %1487 = vmatprep.subr.mxu0 0.0
  %1488 = vmatpush1.msra.mxu0 0.0
  %1489 = vmatprep.subr.mxu0 0.0
  %1490 = vmatpush1.msra.mxu0 0.0
  %1491 = vmatprep.subr.mxu0 0.0
  %1492 = vmatpush1.msra.mxu0 0.0
  %1493 = vmatprep.subr.mxu0 0.0
  %1494 = vmatpush1.msra.mxu0 0.0
  %1495 = vmatprep.subr.mxu0 0.0
  %1496 = vmatpush1.msra.mxu0 0.0
  %1497 = vmatprep.subr.mxu0 0.0
  %1498 = vmatpush1.msra.mxu0 0.0
  %1499 = vmatprep.subr.mxu0 0.0
  %1500 = vmatpush1.msra.mxu0 0.0
  %1501 = vmatprep.subr.mxu0 0.0
  %1502 = vmatpush1.msra.mxu0 0.0
  %1503 = vmatprep.subr.mxu0 0.0
  %1504 = vmatpush1.msra.mxu0 0.0
  %1505 = vmatprep.subr.mxu0 0.0
  %1506 = vmatpush1.msra.mxu0 0.0
  %1507 = vmatprep.subr.mxu0 0.0
  %1508 = vmatpush1.msra.mxu0 0.0
  %1509 = vmatprep.subr.mxu0 0.0
  %1510 = vmatpush1.msra.mxu0 0.0
  %1511 = vmatprep.subr.mxu0 0.0
  %1512 = vmatpush1.msra.mxu0 0.0
  %1513 = vmatprep.subr.mxu0 0.0
  %1514 = vmatpush1.msra.mxu0 0.0
  %1515 = vmatprep.subr.mxu0 0.0
  %1516 = vmatpush1.msra.mxu0 0.0
  %1517 = vmatprep.mubr.f32.mxu0 0.0
  %1518 = vmatmul.mubr.f32.gmra.mrb[0].mxu0 %v1336
  %v1519 = vpop.f32.mrb[0].mxu0
  %v1520 = vadd.f32 0.0, %v1519
  %v1521 = vpop.f32.mrb[0].mxu0
  %1522 = vdwg.mxu0
  %1524 = vset.pattern.permute.xlu0 0
  %1525 = vperm.xlu0 %1524, %v1439
  %v1526 = vpop.permute.xlu0 %1525
  %v1528 = vmul.f32 %v1526, %v1520
  %v1529 = vld [vmem:[%s14] sm:$0xff]
  %v1530 = vadd.f32 %v1528, %v1529
  %v1532 = vsel %vm1419, %v1438, 0
  %1534 = vmatprep.subr.mxu0 0.0
  %1535 = vmatpush1.msra.mxu0 %v1530
  %1536 = vmatprep.subr.mxu0 0.0
  %1537 = vmatpush1.msra.mxu0 0.0
  %1538 = vmatprep.subr.mxu0 0.0
  %1539 = vmatpush1.msra.mxu0 0.0
  %1540 = vmatprep.subr.mxu0 0.0
  %1541 = vmatpush1.msra.mxu0 0.0
  %1542 = vmatprep.subr.mxu0 0.0
  %1543 = vmatpush1.msra.mxu0 0.0
  %1544 = vmatprep.subr.mxu0 0.0
  %1545 = vmatpush1.msra.mxu0 0.0
  %1546 = vmatprep.subr.mxu0 0.0
  %1547 = vmatpush1.msra.mxu0 0.0
  %1548 = vmatprep.subr.mxu0 0.0
  %1549 = vmatpush1.msra.mxu0 0.0
  %1550 = vmatprep.subr.mxu0 0.0
  %1551 = vmatpush1.msra.mxu0 0.0
  %1552 = vmatprep.subr.mxu0 0.0
  %1553 = vmatpush1.msra.mxu0 0.0
  %1554 = vmatprep.subr.mxu0 0.0
  %1555 = vmatpush1.msra.mxu0 0.0
  %1556 = vmatprep.subr.mxu0 0.0
  %1557 = vmatpush1.msra.mxu0 0.0
  %1558 = vmatprep.subr.mxu0 0.0
  %1559 = vmatpush1.msra.mxu0 0.0
  %1560 = vmatprep.subr.mxu0 0.0
  %1561 = vmatpush1.msra.mxu0 0.0
  %1562 = vmatprep.subr.mxu0 0.0
  %1563 = vmatpush1.msra.mxu0 0.0
  %1564 = vmatprep.subr.mxu0 0.0
  %1565 = vmatpush1.msra.mxu0 0.0
  %1566 = vmatprep.subr.mxu0 0.0
  %1567 = vmatpush1.msra.mxu0 0.0
  %1568 = vmatprep.subr.mxu0 0.0
  %1569 = vmatpush1.msra.mxu0 0.0
  %1570 = vmatprep.subr.mxu0 0.0
  %1571 = vmatpush1.msra.mxu0 0.0
  %1572 = vmatprep.subr.mxu0 0.0
  %1573 = vmatpush1.msra.mxu0 0.0
  %1574 = vmatprep.subr.mxu0 0.0
  %1575 = vmatpush1.msra.mxu0 0.0
  %1576 = vmatprep.subr.mxu0 0.0
  %1577 = vmatpush1.msra.mxu0 0.0
  %1578 = vmatprep.subr.mxu0 0.0
  %1579 = vmatpush1.msra.mxu0 0.0
  %1580 = vmatprep.subr.mxu0 0.0
  %1581 = vmatpush1.msra.mxu0 0.0
  %1582 = vmatprep.subr.mxu0 0.0
  %1583 = vmatpush1.msra.mxu0 0.0
  %1584 = vmatprep.subr.mxu0 0.0
  %1585 = vmatpush1.msra.mxu0 0.0
  %1586 = vmatprep.subr.mxu0 0.0
  %1587 = vmatpush1.msra.mxu0 0.0
  %1588 = vmatprep.subr.mxu0 0.0
  %1589 = vmatpush1.msra.mxu0 0.0
  %1590 = vmatprep.subr.mxu0 0.0
  %1591 = vmatpush1.msra.mxu0 0.0
  %1592 = vmatprep.subr.mxu0 0.0
  %1593 = vmatpush1.msra.mxu0 0.0
  %1594 = vmatprep.subr.mxu0 0.0
  %1595 = vmatpush1.msra.mxu0 0.0
  %1596 = vmatprep.subr.mxu0 0.0
  %1597 = vmatpush1.msra.mxu0 0.0
  %1598 = vmatprep.mubr.f32.mxu0 0.0
  %1599 = vmatmul.mubr.f32.gmra.mrb[0].mxu0 %v1532
  %v1600 = vpop.f32.mrb[0].mxu0
  %v1601 = vadd.f32 0.0, %v1600
  %v1602 = vpop.f32.mrb[0].mxu0
  %1603 = vdwg.mxu0
  %v1604 = vmax.f32 %v1601, 0.0
  %v1605 = vld [vmem:[%s15] sm:$0xff]
  %v1606 = vmul.f32 %v1604, %v1605
  %v1607 = vsel %vm1419, %v1606, 0.0
  %1608 = vadd.xlane.f32.xlu0 %v1607
  %v1609 = vpop.xlane.xlu0 %1608
  %v1610 = vld [vmem:[%s16] sm:$0x3]
  %v1611 = vld [vmem:[#allocation2] sm:$0x1]
  %v1613 = vlaneseq
  %v1614 = vshrl.u32 %v1613, 7
  %v1615 = vsub.s32 0, %v1614
  %v1616 = vrot.slane %v1611, %v1615
  %v1619 = vsel %vm1419, %v1610, 0
  %1621 = vmatprep.subr.mxu0 0.0
  %1622 = vmatpush1.msra.mxu0 %v1609
  %1623 = vmatprep.subr.mxu0 0.0
  %1624 = vmatpush1.msra.mxu0 0.0
  %1625 = vmatprep.subr.mxu0 0.0
  %1626 = vmatpush1.msra.mxu0 0.0
  %1627 = vmatprep.subr.mxu0 0.0
  %1628 = vmatpush1.msra.mxu0 0.0
  %1629 = vmatprep.subr.mxu0 0.0
  %1630 = vmatpush1.msra.mxu0 0.0
  %1631 = vmatprep.subr.mxu0 0.0
  %1632 = vmatpush1.msra.mxu0 0.0
  %1633 = vmatprep.subr.mxu0 0.0
  %1634 = vmatpush1.msra.mxu0 0.0
  %1635 = vmatprep.subr.mxu0 0.0
  %1636 = vmatpush1.msra.mxu0 0.0
  %1637 = vmatprep.subr.mxu0 0.0
  %1638 = vmatpush1.msra.mxu0 0.0
  %1639 = vmatprep.subr.mxu0 0.0
  %1640 = vmatpush1.msra.mxu0 0.0
  %1641 = vmatprep.subr.mxu0 0.0
  %1642 = vmatpush1.msra.mxu0 0.0
  %1643 = vmatprep.subr.mxu0 0.0
  %1644 = vmatpush1.msra.mxu0 0.0
  %1645 = vmatprep.subr.mxu0 0.0
  %1646 = vmatpush1.msra.mxu0 0.0
  %1647 = vmatprep.subr.mxu0 0.0
  %1648 = vmatpush1.msra.mxu0 0.0
  %1649 = vmatprep.subr.mxu0 0.0
  %1650 = vmatpush1.msra.mxu0 0.0
  %1651 = vmatprep.subr.mxu0 0.0
  %1652 = vmatpush1.msra.mxu0 0.0
  %1653 = vmatprep.subr.mxu0 0.0
  %1654 = vmatpush1.msra.mxu0 0.0
  %1655 = vmatprep.subr.mxu0 0.0
  %1656 = vmatpush1.msra.mxu0 0.0
  %1657 = vmatprep.subr.mxu0 0.0
  %1658 = vmatpush1.msra.mxu0 0.0
  %1659 = vmatprep.subr.mxu0 0.0
  %1660 = vmatpush1.msra.mxu0 0.0
  %1661 = vmatprep.subr.mxu0 0.0
  %1662 = vmatpush1.msra.mxu0 0.0
  %1663 = vmatprep.subr.mxu0 0.0
  %1664 = vmatpush1.msra.mxu0 0.0
  %1665 = vmatprep.subr.mxu0 0.0
  %1666 = vmatpush1.msra.mxu0 0.0
  %1667 = vmatprep.subr.mxu0 0.0
  %1668 = vmatpush1.msra.mxu0 0.0
  %1669 = vmatprep.subr.mxu0 0.0
  %1670 = vmatpush1.msra.mxu0 0.0
  %1671 = vmatprep.subr.mxu0 0.0
  %1672 = vmatpush1.msra.mxu0 0.0
  %1673 = vmatprep.subr.mxu0 0.0
  %1674 = vmatpush1.msra.mxu0 0.0
  %1675 = vmatprep.subr.mxu0 0.0
  %1676 = vmatpush1.msra.mxu0 0.0
  %1677 = vmatprep.subr.mxu0 0.0
  %1678 = vmatpush1.msra.mxu0 0.0
  %1679 = vmatprep.subr.mxu0 0.0
  %1680 = vmatpush1.msra.mxu0 0.0
  %1681 = vmatprep.subr.mxu0 0.0
  %1682 = vmatpush1.msra.mxu0 0.0
  %1683 = vmatprep.subr.mxu0 0.0
  %1684 = vmatpush1.msra.mxu0 0.0
  %1685 = vmatprep.mubr.f32.mxu0 0.0
  %1686 = vmatmul.mubr.f32.gmra.mrb[0].mxu0 %v1619
  %v1687 = vpop.f32.mrb[0].mxu0
  %v1688 = vadd.f32 %v1616, %v1687
  %v1689 = vpop.f32.mrb[0].mxu0
  %1690 = vdwg.mxu0
  %v1691 = vsub.f32 0.0, %v1688
  %v1692 = vmul.f32 %v1691, 1.442695
  %v1693 = vpow.pop %v1692
  %v1694 = vadd.f32 %v1693, 1.0
  %v1695 = vrcp.pop %v1694
  %v1696 = vmul.f32 1.0, %v1695
  %vm1697 = vcmask 1024
  %1698 = vst.msk [vmem:[%s18] sm:$0x3] %vm1697, %v1696
  // Predicated region
  $region74: #{tpu_custom_call.1} parent=0 // pred_check
    _
  $region75: #{tpu_custom_call.1} parent=0 // pred_check_branch
    %1700 = sbr.rel (0) target = $region77
  $region76: #{tpu_custom_call.1} parent=0 // pred_region
    _
  $region77: #{tpu_custom_call.1} parent=0 // pred_fallthru
    _
  // Predicated region
  $region78: #{tpu_custom_call.1} parent=0 // pred_check
    _
  $region79: #{tpu_custom_call.1} parent=0 // pred_check_branch
    %1702 = sbr.rel (0) target = $region81
  $region80: #{tpu_custom_call.1} parent=0 // pred_region
    _
  $region81: #{tpu_custom_call.1} parent=0 // pred_fallthru
    _

</llo_original>
